<compile_context>
chip_gen: v6e
topology: v6e:2x2x1
jax: 0.10.0
libtpu: 0.0.40
codegen_flags: <defaults>
</compile_context>

<pallas_src>
import jax
import jax.numpy as jnp
from jax.experimental import pallas as pl
from jax.experimental.pallas import tpu as pltpu


def _round_up(x, m):
    return (x + m - 1) // m * m


def _largest_divisor_tile(n, target, granule):
    """Largest multiple of `granule` that divides n and is <= target."""
    top = (min(target, n) // granule) * granule
    for cand in range(top, 0, -granule):
        if n % cand == 0:
            return cand
    return n  # no aligned divisor; fall back to the full dimension


def _vmem_capacity_bytes():
    """Per-core VMEM capacity; conservative 64 MiB (v7x per-TC) fallback."""
    try:
        info = pltpu.get_tpu_info()
        cap = getattr(info, "vmem_capacity_bytes", None)
        if cap:
            return int(cap)
    except Exception:
        pass
    return 64 << 20


# ----------------------------- kernels --------------------------------------


def ffn_resident_kernel(x_ref, w1_ref, b1_ref, w2_ref, b2_ref, o_ref):
    # Weights stay resident in VMEM (constant index_map); one row tile / step.
    h = jnp.dot(x_ref[...], w1_ref[...], preferred_element_type=jnp.float32)
    h = jnp.maximum(h + b1_ref[...].astype(jnp.float32), 0.0)
    # dropout == identity at inference.
    y = jnp.dot(h.astype(w2_ref.dtype), w2_ref[...],
                preferred_element_type=jnp.float32)
    o_ref[...] = (y + b2_ref[...].astype(jnp.float32)).astype(o_ref.dtype)


def ffn_chunked_kernel(x_ref, w1_ref, b1_ref, w2_ref, b2_ref, o_ref, acc_ref):
    # x_ref:  (tile_m, d_model)   w1_ref: (d_model, tile_f)   b1_ref: (1, tile_f)
    # w2_ref: (tile_f, d_model)   b2_ref: (1, d_model)
    # o_ref:  (tile_m, d_model)   acc_ref: (tile_m, d_model) f32 scratch
    k = pl.program_id(1)

    @pl.when(k == 0)
    def _init():
        # Fold the second bias into the accumulator init (hoists the b2 add
        # out of the reduction loop).
        acc_ref[...] = jnp.broadcast_to(
            b2_ref[...], acc_ref.shape).astype(jnp.float32)

    h = jnp.dot(x_ref[...], w1_ref[...], preferred_element_type=jnp.float32)
    h = jnp.maximum(h + b1_ref[...].astype(jnp.float32), 0.0)
    # dropout == identity at inference.
    acc_ref[...] += jnp.dot(h.astype(w2_ref.dtype), w2_ref[...],
                            preferred_element_type=jnp.float32)

    @pl.when(k == pl.num_programs(1) - 1)
    def _finalize():
        o_ref[...] = acc_ref[...].astype(o_ref.dtype)


# ----------------------------- wrapper ---------------------------------------


def positionwise_ffn(x, w1_t, b1, w2_t, b2, *, tile_m=None, tile_f=None,
                     weights_resident=None, vmem_limit_bytes=None):
    """y = relu(x @ w1_t + b1) @ w2_t + b2 (dropout = identity, eval mode).

    x: [B, S, d_model]; w1_t: [d_model, d_ff]; w2_t: [d_ff, d_model].
    weights_resident: None = auto (chosen from the VMEM budget), or force.
    """
    B, S, d_model = x.shape
    d_ff = w1_t.shape[1]
    assert w1_t.shape == (d_model, d_ff)
    assert w2_t.shape == (d_ff, d_model)
    assert b1.shape == (d_ff,) and b2.shape == (d_model,)

    M = B * S
    x2d = x.reshape(M, d_model)
    b1_2d = b1.reshape(1, d_ff)
    b2_2d = b2.reshape(1, d_model)

    bx = x.dtype.itemsize
    bw = w1_t.dtype.itemsize
    bb = b1.dtype.itemsize
    is_bf16 = x.dtype == jnp.bfloat16
    sub = 16 if is_bf16 else 8  # sublane packing granularity

    vmem_cap = _vmem_capacity_bytes()
    budget = int(vmem_cap * 0.85)  # headroom for compiler-internal scratch

    weight_bytes = 2 * d_model * d_ff * bw
    bias_bytes = (d_ff + d_model) * bb

    # Resident variant working set: double-buffered x/out tiles, f32 hidden
    # activations + their cast copy, plus 2x the full weights (conservative:
    # default double buffering even though the constant index_map only DMAs
    # them once).
    per_row_res = 4 * d_model * bx + d_ff * (4 + bw)
    fixed_res = 2 * weight_bytes + 2 * bias_bytes

    if weights_resident is None:
        room = (budget - fixed_res) // per_row_res if budget > fixed_res else 0
        weights_resident = (tile_f is None) and room >= min(256, _round_up(M, sub))

    if weights_resident:
        # ------- weights resident in VMEM, 1-D grid over row tiles ----------
        max_tile_m = (budget - fixed_res) // per_row_res if budget > fixed_res else sub
        if tile_m is None:
            target_m = 1024 if is_bf16 else 512
            tile_m = min(target_m, _round_up(M, sub), max(sub, int(max_tile_m)))
        tile_m = max(sub, _round_up(int(tile_m), sub))

        M_pad = _round_up(M, tile_m)
        if M_pad != M:
            x2d = jnp.pad(x2d, ((0, M_pad - M), (0, 0)))

        grid = (M_pad // tile_m,)
        kernel = ffn_resident_kernel
        in_specs = [
            pl.BlockSpec((tile_m, d_model), lambda i: (i, 0)),   # x tile
            pl.BlockSpec((d_model, d_ff),   lambda i: (0, 0)),   # W1^T (resident)
            pl.BlockSpec((1, d_ff),         lambda i: (0, 0)),   # b1   (resident)
            pl.BlockSpec((d_ff, d_model),   lambda i: (0, 0)),   # W2^T (resident)
            pl.BlockSpec((1, d_model),      lambda i: (0, 0)),   # b2   (resident)
        ]
        out_specs = pl.BlockSpec((tile_m, d_model), lambda i: (i, 0))
        scratch_shapes = []
        dim_sem = ("parallel",)
        need = fixed_res + tile_m * per_row_res
        weight_reads = 1                               # weights DMA'd once
    else:
        # ------- d_ff-chunked fallback (weights streamed per row tile) ------
        granule = 256 if d_ff % 256 == 0 else 128      # v6e/v7x MXU width
        if tile_f is None:
            tile_f = _largest_divisor_tile(d_ff, target=2048, granule=granule)
        tile_f = int(tile_f)
        assert d_ff % tile_f == 0, "tile_f must divide d_ff"

        # Per-step working set: double-buffered x/out and W1/W2 chunks,
        # f32 accumulator, f32 hidden chunk + its cast copy, biases.
        fixed_ch = 4 * d_model * tile_f * bw + 2 * bias_bytes
        per_row_ch = 4 * d_model * bx + 4 * d_model + tile_f * (4 + bw)
        max_tile_m = (budget - fixed_ch) // per_row_ch if budget > fixed_ch else sub
        if tile_m is None:
            # Clear the weight-restream roofline (>= ~640 rows bf16 / ~1280
            # f32 on v6e), VMEM permitting.
            tile_m = min(1024, _round_up(M, sub), max(sub, int(max_tile_m)))
        tile_m = max(sub, _round_up(int(tile_m), sub))

        M_pad = _round_up(M, tile_m)
        if M_pad != M:
            x2d = jnp.pad(x2d, ((0, M_pad - M), (0, 0)))

        grid = (M_pad // tile_m, d_ff // tile_f)
        kernel = ffn_chunked_kernel
        in_specs = [
            pl.BlockSpec((tile_m, d_model), lambda i, k: (i, 0)),   # x tile
            pl.BlockSpec((d_model, tile_f), lambda i, k: (0, k)),   # W1^T chunk
            pl.BlockSpec((1, tile_f),       lambda i, k: (0, k)),   # b1 chunk
            pl.BlockSpec((tile_f, d_model), lambda i, k: (k, 0)),   # W2^T chunk
            pl.BlockSpec((1, d_model),      lambda i, k: (0, 0)),   # b2
        ]
        out_specs = pl.BlockSpec((tile_m, d_model), lambda i, k: (i, 0))
        scratch_shapes = [pltpu.VMEM((tile_m, d_model), jnp.float32)]
        dim_sem = ("parallel", "arbitrary")
        need = fixed_ch + tile_m * per_row_ch
        weight_reads = M_pad // tile_m                 # re-streamed per M tile

    if vmem_limit_bytes is None:
        vmem_limit_bytes = int(min(max(need + (8 << 20), 16 << 20), vmem_cap))

    cost = pl.CostEstimate(
        flops=4 * M_pad * d_model * d_ff,              # two matmuls
        transcendentals=0,
        bytes_accessed=(M_pad * d_model * bx           # x
                        + weight_reads * weight_bytes  # W1+W2 (per restream)
                        + bias_bytes                   # biases
                        + M_pad * d_model * bx))       # out

    out2d = pl.pallas_call(
        kernel,
        out_shape=jax.ShapeDtypeStruct((M_pad, d_model), x.dtype),
        grid_spec=pltpu.PrefetchScalarGridSpec(
            num_scalar_prefetch=0,
            grid=grid,
            in_specs=in_specs,
            out_specs=out_specs,
            scratch_shapes=scratch_shapes,
        ),
        compiler_params=pltpu.CompilerParams(
            dimension_semantics=dim_sem,
            vmem_limit_bytes=int(vmem_limit_bytes)),
        cost_estimate=cost,
    )(x2d, w1_t, b1_2d, w2_t, b2_2d)

    if M_pad != M:
        out2d = out2d[:M]
    return out2d.reshape(B, S, d_model)


if __name__ == "__main__":
    # Small shapes consistent with the module (d_model -> d_ff -> d_model);
    # M = B*S = 240 also exercises ragged-M padding on the chunked path.
    B, S, d_model, d_ff = 2, 120, 128, 512

    key = jax.random.PRNGKey(0)
    kx, kw1, kb1, kw2, kb2 = jax.random.split(key, 5)

    x = jax.random.normal(kx, (B, S, d_model), dtype=jnp.float32)

    # Deterministic "Linear" params. PyTorch stores W as (out, in); we keep the
    # transposed (in, out) layout for the kernel's x @ W form.
    w1_t = jax.random.normal(kw1, (d_model, d_ff), dtype=jnp.float32) * 0.02
    b1 = jax.random.normal(kb1, (d_ff,), dtype=jnp.float32) * 0.02
    w2_t = jax.random.normal(kw2, (d_ff, d_model), dtype=jnp.float32) * 0.02
    b2 = jax.random.normal(kb2, (d_model,), dtype=jnp.float32) * 0.02

    ref = jnp.maximum(x @ w1_t + b1, 0.0) @ w2_t + b2

    # Preferred path: weights resident in VMEM, 1-D grid over row tiles.
    out_res = jax.block_until_ready(positionwise_ffn(x, w1_t, b1, w2_t, b2))
    assert out_res.shape == (B, S, d_model)
    assert jnp.allclose(out_res, ref, atol=2e-4, rtol=2e-4)

    # Fallback path: d_ff-chunked reduction with an f32 accumulator (also
    # exercises accumulator init/finalize and ragged-M padding: 240 -> 256).
    out_ch = jax.block_until_ready(
        positionwise_ffn(x, w1_t, b1, w2_t, b2,
                         tile_m=128, tile_f=256, weights_resident=False))
    assert out_ch.shape == (B, S, d_model)
    assert jnp.allclose(out_ch, ref, atol=2e-4, rtol=2e-4)

    print("KERNEL_OK")
</pallas_src>

<mosaic_0001>
module attributes {stable_mosaic.version = 11 : i64} {
  func.func @ffn_resident_kernel(%arg0: i32, %arg1: memref<240x128xf32, #tpu.memory_space<vmem>>, %arg2: memref<128x512xf32, #tpu.memory_space<vmem>>, %arg3: memref<1x512xf32, #tpu.memory_space<vmem>>, %arg4: memref<512x128xf32, #tpu.memory_space<vmem>>, %arg5: memref<1x128xf32, #tpu.memory_space<vmem>>, %arg6: memref<240x128xf32, #tpu.memory_space<vmem>>) attributes {dimension_semantics = [#tpu.dimension_semantics<parallel>], iteration_bounds = array<i64: 1>, scalar_prefetch = 0 : i64, scratch_operands = 0 : i64, tpu.core_type = #tpu.core_type<tc>, window_params = [{transform_indices = @transform_0, window_bounds = array<i64: 240, 128>}, {pipeline_mode = #tpu.pipeline_mode<synchronous>, transform_indices = @transform_1, window_bounds = array<i64: 128, 512>}, {pipeline_mode = #tpu.pipeline_mode<synchronous>, transform_indices = @transform_2, window_bounds = array<i64: 1, 512>}, {pipeline_mode = #tpu.pipeline_mode<synchronous>, transform_indices = @transform_3, window_bounds = array<i64: 512, 128>}, {pipeline_mode = #tpu.pipeline_mode<synchronous>, transform_indices = @transform_4, window_bounds = array<i64: 1, 128>}, {transform_indices = @transform_5, window_bounds = array<i64: 240, 128>}]} {
    %c0 = arith.constant 0 : index
    %c0_0 = arith.constant 0 : index
    %0 = vector.load %arg1[%c0, %c0_0] : memref<240x128xf32, #tpu.memory_space<vmem>>, vector<240x128xf32>
    %c0_1 = arith.constant 0 : index
    %c0_2 = arith.constant 0 : index
    %1 = vector.load %arg2[%c0_1, %c0_2] : memref<128x512xf32, #tpu.memory_space<vmem>>, vector<128x512xf32>
    %cst = arith.constant dense<0.000000e+00> : vector<240x512xf32>
    %2 = tpu.matmul %0, %1, %cst {dimension_numbers = #tpu.dot_dimension_numbers<[1], [0], [0], [1], [0, 0, 1, 1], [], []>} : vector<240x128xf32>, vector<128x512xf32>, vector<240x512xf32> -> vector<240x512xf32>
    %c0_3 = arith.constant 0 : index
    %c0_4 = arith.constant 0 : index
    %3 = vector.load %arg3[%c0_3, %c0_4] : memref<1x512xf32, #tpu.memory_space<vmem>>, vector<1x512xf32>
    %4 = vector.broadcast %3 : vector<1x512xf32> to vector<240x512xf32>
    %5 = arith.addf %2, %4 : vector<240x512xf32>
    %cst_5 = arith.constant 0.000000e+00 : f32
    %6 = vector.broadcast %cst_5 : f32 to vector<240x512xf32>
    %7 = arith.maximumf %5, %6 : vector<240x512xf32>
    %c0_6 = arith.constant 0 : index
    %c0_7 = arith.constant 0 : index
    %8 = vector.load %arg4[%c0_6, %c0_7] : memref<512x128xf32, #tpu.memory_space<vmem>>, vector<512x128xf32>
    %cst_8 = arith.constant dense<0.000000e+00> : vector<240x128xf32>
    %9 = tpu.matmul %7, %8, %cst_8 {dimension_numbers = #tpu.dot_dimension_numbers<[1], [0], [0], [1], [0, 0, 1, 1], [], []>} : vector<240x512xf32>, vector<512x128xf32>, vector<240x128xf32> -> vector<240x128xf32>
    %c0_9 = arith.constant 0 : index
    %c0_10 = arith.constant 0 : index
    %10 = vector.load %arg5[%c0_9, %c0_10] : memref<1x128xf32, #tpu.memory_space<vmem>>, vector<1x128xf32>
    %11 = vector.broadcast %10 : vector<1x128xf32> to vector<240x128xf32>
    %12 = arith.addf %9, %11 : vector<240x128xf32>
    %c0_11 = arith.constant 0 : index
    %c0_12 = arith.constant 0 : index
    %13 = vector.load %arg6[%c0_11, %c0_12] : memref<240x128xf32, #tpu.memory_space<vmem>>, vector<240x128xf32>
    tpu.vector_store %arg6[%c0_11, %c0_12], %12 {strides = array<i32>} : memref<240x128xf32, #tpu.memory_space<vmem>>, vector<240x128xf32>,
    return
  }
  func.func @transform_0(%arg0: i32) -> (i32, i32) {
    %c0_i32 = arith.constant 0 : i32
    %c0_i32_0 = arith.constant 0 : i32
    return %arg0, %c0_i32 : i32, i32
  }
  func.func @transform_1(%arg0: i32) -> (i32, i32) {
    %c0_i32 = arith.constant 0 : i32
    %c0_i32_0 = arith.constant 0 : i32
    %c0_i32_1 = arith.constant 0 : i32
    return %c0_i32, %c0_i32_0 : i32, i32
  }
  func.func @transform_2(%arg0: i32) -> (i32, i32) {
    %c0_i32 = arith.constant 0 : i32
    %c0_i32_0 = arith.constant 0 : i32
    %c0_i32_1 = arith.constant 0 : i32
    return %c0_i32, %c0_i32_0 : i32, i32
  }
  func.func @transform_3(%arg0: i32) -> (i32, i32) {
    %c0_i32 = arith.constant 0 : i32
    %c0_i32_0 = arith.constant 0 : i32
    %c0_i32_1 = arith.constant 0 : i32
    return %c0_i32, %c0_i32_0 : i32, i32
  }
  func.func @transform_4(%arg0: i32) -> (i32, i32) {
    %c0_i32 = arith.constant 0 : i32
    %c0_i32_0 = arith.constant 0 : i32
    %c0_i32_1 = arith.constant 0 : i32
    return %c0_i32, %c0_i32_0 : i32, i32
  }
  func.func @transform_5(%arg0: i32) -> (i32, i32) {
    %c0_i32 = arith.constant 0 : i32
    %c0_i32_0 = arith.constant 0 : i32
    return %arg0, %c0_i32 : i32, i32
  }
}

</mosaic_0001>

<llo_original>
// kernel: tpu_custom_call.1
$region0: #{tpu_custom_call.1}
  #allocation0 [shape = 'u32[]', space=smem, size = 0x4, offset = 0x4, fixed_abs, tag = 'smem constant byte address 0x4 - core index']
  #allocation1 [shape = 'u32[144,128]{1,0:T(1,128)}', space=vmem, size = 0x12000, scoped, tag = 'internal scratch']
  %s0 = inlined_call_operand.hbm [shape: f32[240,128], index: 0, kind: input, shape index: {}]
  %s1 = inlined_call_operand.hbm [shape: f32[128,512], index: 1, kind: input, shape index: {}]
  %s2 = inlined_call_operand.hbm [shape: f32[1,512], index: 2, kind: input, shape index: {}]
  %s3 = inlined_call_operand.hbm [shape: f32[512,128], index: 3, kind: input, shape index: {}]
  %s4 = inlined_call_operand.vmem [shape: f32[1,128], index: 4, kind: input, shape index: {}]
  %s5 = inlined_call_operand.hbm [shape: f32[240,128], index: 5, kind: output, shape index: {}]
  %s6 = sld [smem:[#allocation0]]
  $region46: #{tpu_custom_call.1} parent=0
    _
  %s8 = ssub.s32 1, %s6
  %s9 = scalar_select 0, %s8, %s6
  $region1: #{tpu_custom_call.1} parent=0
    #allocation2 [shape = 'u8[122880]{0}', space=vmem, size = 0x1e000, scoped, tag = 'input window, operand 0, single buffered']
    #allocation3 [shape = 's32[1]{0}', space=sflag, size = 0x4, scoped, tag = 'scoped memory for tpu_custom_call.1']
    #allocation4 [shape = 's32[1]{0}', space=sflag, size = 0x4, scoped, tag = 'scoped memory for tpu_custom_call.1']
    #allocation5 [shape = 'u8[262144]{0}', space=vmem, size = 0x40000, scoped, tag = 'input window, operand 1, single buffered']
    #allocation6 [shape = 's32[1]{0}', space=sflag, size = 0x4, scoped, tag = 'scoped memory for tpu_custom_call.1']
    #allocation7 [shape = 'u8[2048]{0}', space=vmem, size = 0x800, scoped, tag = 'input window, operand 2, single buffered']
    #allocation8 [shape = 'u8[262144]{0}', space=vmem, size = 0x40000, scoped, tag = 'input window, operand 3, single buffered']
    #allocation9 [shape = 's32[1]{0}', space=sflag, size = 0x4, scoped, tag = 'scoped memory for tpu_custom_call.1']
    #allocation10 [shape = 'u8[122880]{0}', space=vmem, size = 0x1e000, scoped, tag = 'output window, operand 0, single buffered']
    %10 = vsyncpa [#allocation3], 0
    %11 = vsyncpa [#allocation6], 0
    %12 = vsyncpa [#allocation9], 0
    %13 = vsyncpa [#allocation4], 0
    // Predicated region
    $region2: #{tpu_custom_call.1} parent=1 // pred_check
      _
    $region3: #{tpu_custom_call.1} parent=1 // pred_check_branch
      %15 = sbr.rel (0) target = $region5
    $region4: #{tpu_custom_call.1} parent=1 // pred_region
      %s17 = ssub.s32 3840, 3840
      %18 = vsyncadd [#allocation3], %s17
      %s19 = sshll.u32 [#allocation2], 4
      %s20 = int_to_ptr.vmem [resolvable:$true] %s19
      %25 = dma.hbm_to_vmem [thread:$0]  %s0, 3840, %s20, [#allocation3], 128, 128, 8
    $region5: #{tpu_custom_call.1} parent=1 // pred_fallthru
      _
    // Predicated region
    $region6: #{tpu_custom_call.1} parent=1 // pred_check
      _
    $region7: #{tpu_custom_call.1} parent=1 // pred_check_branch
      %27 = sbr.rel (0) target = $region9
    $region8: #{tpu_custom_call.1} parent=1 // pred_region
      %s29 = ssub.s32 8192, 8192
      %30 = vsyncadd [#allocation6], %s29
      %s31 = sshll.u32 [#allocation5], 4
      %s32 = int_to_ptr.vmem [resolvable:$true] %s31
      %37 = dma.hbm_to_vmem [thread:$0]  %s1, 8192, %s32, [#allocation6], 512, 512, 32
    $region9: #{tpu_custom_call.1} parent=1 // pred_fallthru
      _
    // Predicated region
    $region10: #{tpu_custom_call.1} parent=1 // pred_check
      _
    $region11: #{tpu_custom_call.1} parent=1 // pred_check_branch
      %39 = sbr.rel (0) target = $region13
    $region12: #{tpu_custom_call.1} parent=1 // pred_region
      %s41 = ssub.s32 64, 64
      %42 = vsyncadd [#allocation6], %s41
      %s44 = sshll.u32 [#allocation7], 4
      %s45 = int_to_ptr.vmem [resolvable:$true] %s44
      %47 = dma.hbm_to_vmem [thread:$0]  %s2, 64, %s45, [#allocation6]
    $region13: #{tpu_custom_call.1} parent=1 // pred_fallthru
      _
    // Predicated region
    $region14: #{tpu_custom_call.1} parent=1 // pred_check
      _
    $region15: #{tpu_custom_call.1} parent=1 // pred_check_branch
      %49 = sbr.rel (0) target = $region17
    $region16: #{tpu_custom_call.1} parent=1 // pred_region
      %s51 = ssub.s32 8192, 8192
      %52 = vsyncadd [#allocation9], %s51
      %s53 = sshll.u32 [#allocation8], 4
      %s54 = int_to_ptr.vmem [resolvable:$true] %s53
      %59 = dma.hbm_to_vmem [thread:$0]  %s3, 8192, %s54, [#allocation9], 128, 128, 8
    $region17: #{tpu_custom_call.1} parent=1 // pred_fallthru
      _
    // Predicated region
    $region18: #{tpu_custom_call.1} parent=1 // pred_check
      _
    $region19: #{tpu_custom_call.1} parent=1 // pred_check_branch
      %61 = sbr.rel (0) target = $region21
    $region20: #{tpu_custom_call.1} parent=1 // pred_region
      _
    $region21: #{tpu_custom_call.1} parent=1 // pred_fallthru
      _
    // Predicated region
    $region22: #{tpu_custom_call.1} parent=1 // pred_check
      _
    $region23: #{tpu_custom_call.1} parent=1 // pred_check_branch
      %63 = sbr.rel (0) target = $region25
    $region24: #{tpu_custom_call.1} parent=1 // pred_region
      %64 = dma.done [#allocation3], 3840
    $region25: #{tpu_custom_call.1} parent=1 // pred_fallthru
      _
    // Predicated region
    $region26: #{tpu_custom_call.1} parent=1 // pred_check
      _
    $region27: #{tpu_custom_call.1} parent=1 // pred_check_branch
      %66 = sbr.rel (0) target = $region29
    $region28: #{tpu_custom_call.1} parent=1 // pred_region
      %67 = dma.done [#allocation6], 8192
    $region29: #{tpu_custom_call.1} parent=1 // pred_fallthru
      _
    // Predicated region
    $region30: #{tpu_custom_call.1} parent=1 // pred_check
      _
    $region31: #{tpu_custom_call.1} parent=1 // pred_check_branch
      %69 = sbr.rel (0) target = $region33
    $region32: #{tpu_custom_call.1} parent=1 // pred_region
      %70 = dma.done [#allocation6], 64
    $region33: #{tpu_custom_call.1} parent=1 // pred_fallthru
      _
    // Predicated region
    $region34: #{tpu_custom_call.1} parent=1 // pred_check
      _
    $region35: #{tpu_custom_call.1} parent=1 // pred_check_branch
      %72 = sbr.rel (0) target = $region37
    $region36: #{tpu_custom_call.1} parent=1 // pred_region
      %73 = dma.done [#allocation9], 8192
    $region37: #{tpu_custom_call.1} parent=1 // pred_fallthru
      _
    %v74 = vld [vmem:[#allocation2] sm:$0xff]
    %v75 = vld [vmem:[#allocation2 + $0x8] sm:$0xff]
    %v76 = vld [vmem:[#allocation2 + $0x10] sm:$0xff]
    %v77 = vld [vmem:[#allocation2 + $0x18] sm:$0xff]
    %v78 = vld [vmem:[#allocation2 + $0x20] sm:$0xff]
    %v79 = vld [vmem:[#allocation2 + $0x28] sm:$0xff]
    %v80 = vld [vmem:[#allocation2 + $0x30] sm:$0xff]
    %v81 = vld [vmem:[#allocation2 + $0x38] sm:$0xff]
    %v82 = vld [vmem:[#allocation2 + $0x40] sm:$0xff]
    %v83 = vld [vmem:[#allocation2 + $0x48] sm:$0xff]
    %v84 = vld [vmem:[#allocation2 + $0x50] sm:$0xff]
    %v85 = vld [vmem:[#allocation2 + $0x58] sm:$0xff]
    %v86 = vld [vmem:[#allocation2 + $0x60] sm:$0xff]
    %v87 = vld [vmem:[#allocation2 + $0x68] sm:$0xff]
    %v88 = vld [vmem:[#allocation2 + $0x70] sm:$0xff]
    %v89 = vld [vmem:[#allocation2 + $0x78] sm:$0xff]
    %v90 = vld [vmem:[#allocation2 + $0x80] sm:$0xff]
    %v91 = vld [vmem:[#allocation2 + $0x88] sm:$0xff]
    %v92 = vld [vmem:[#allocation2 + $0x90] sm:$0xff]
    %v93 = vld [vmem:[#allocation2 + $0x98] sm:$0xff]
    %v94 = vld [vmem:[#allocation2 + $0xa0] sm:$0xff]
    %v95 = vld [vmem:[#allocation2 + $0xa8] sm:$0xff]
    %v96 = vld [vmem:[#allocation2 + $0xb0] sm:$0xff]
    %v97 = vld [vmem:[#allocation2 + $0xb8] sm:$0xff]
    %v98 = vld [vmem:[#allocation2 + $0xc0] sm:$0xff]
    %v99 = vld [vmem:[#allocation2 + $0xc8] sm:$0xff]
    %v100 = vld [vmem:[#allocation2 + $0xd0] sm:$0xff]
    %v101 = vld [vmem:[#allocation2 + $0xd8] sm:$0xff]
    %v102 = vld [vmem:[#allocation2 + $0xe0] sm:$0xff]
    %v103 = vld [vmem:[#allocation2 + $0xe8] sm:$0xff]
    %v104 = vld [vmem:[#allocation5] sm:$0xff]
    %v105 = vld [vmem:[#allocation5 + $0x8] sm:$0xff]
    %v106 = vld [vmem:[#allocation5 + $0x10] sm:$0xff]
    %v107 = vld [vmem:[#allocation5 + $0x18] sm:$0xff]
    %v108 = vld [vmem:[#allocation5 + $0x20] sm:$0xff]
    %v109 = vld [vmem:[#allocation5 + $0x28] sm:$0xff]
    %v110 = vld [vmem:[#allocation5 + $0x30] sm:$0xff]
    %v111 = vld [vmem:[#allocation5 + $0x38] sm:$0xff]
    %v112 = vld [vmem:[#allocation5 + $0x40] sm:$0xff]
    %v113 = vld [vmem:[#allocation5 + $0x48] sm:$0xff]
    %v114 = vld [vmem:[#allocation5 + $0x50] sm:$0xff]
    %v115 = vld [vmem:[#allocation5 + $0x58] sm:$0xff]
    %v116 = vld [vmem:[#allocation5 + $0x60] sm:$0xff]
    %v117 = vld [vmem:[#allocation5 + $0x68] sm:$0xff]
    %v118 = vld [vmem:[#allocation5 + $0x70] sm:$0xff]
    %v119 = vld [vmem:[#allocation5 + $0x78] sm:$0xff]
    %v120 = vld [vmem:[#allocation5 + $0x80] sm:$0xff]
    %v121 = vld [vmem:[#allocation5 + $0x88] sm:$0xff]
    %v122 = vld [vmem:[#allocation5 + $0x90] sm:$0xff]
    %v123 = vld [vmem:[#allocation5 + $0x98] sm:$0xff]
    %v124 = vld [vmem:[#allocation5 + $0xa0] sm:$0xff]
    %v125 = vld [vmem:[#allocation5 + $0xa8] sm:$0xff]
    %v126 = vld [vmem:[#allocation5 + $0xb0] sm:$0xff]
    %v127 = vld [vmem:[#allocation5 + $0xb8] sm:$0xff]
    %v128 = vld [vmem:[#allocation5 + $0xc0] sm:$0xff]
    %v129 = vld [vmem:[#allocation5 + $0xc8] sm:$0xff]
    %v130 = vld [vmem:[#allocation5 + $0xd0] sm:$0xff]
    %v131 = vld [vmem:[#allocation5 + $0xd8] sm:$0xff]
    %v132 = vld [vmem:[#allocation5 + $0xe0] sm:$0xff]
    %v133 = vld [vmem:[#allocation5 + $0xe8] sm:$0xff]
    %v134 = vld [vmem:[#allocation5 + $0xf0] sm:$0xff]
    %v135 = vld [vmem:[#allocation5 + $0xf8] sm:$0xff]
    %v136 = vld [vmem:[#allocation5 + $0x100] sm:$0xff]
    %v137 = vld [vmem:[#allocation5 + $0x108] sm:$0xff]
    %v138 = vld [vmem:[#allocation5 + $0x110] sm:$0xff]
    %v139 = vld [vmem:[#allocation5 + $0x118] sm:$0xff]
    %v140 = vld [vmem:[#allocation5 + $0x120] sm:$0xff]
    %v141 = vld [vmem:[#allocation5 + $0x128] sm:$0xff]
    %v142 = vld [vmem:[#allocation5 + $0x130] sm:$0xff]
    %v143 = vld [vmem:[#allocation5 + $0x138] sm:$0xff]
    %v144 = vld [vmem:[#allocation5 + $0x140] sm:$0xff]
    %v145 = vld [vmem:[#allocation5 + $0x148] sm:$0xff]
    %v146 = vld [vmem:[#allocation5 + $0x150] sm:$0xff]
    %v147 = vld [vmem:[#allocation5 + $0x158] sm:$0xff]
    %v148 = vld [vmem:[#allocation5 + $0x160] sm:$0xff]
    %v149 = vld [vmem:[#allocation5 + $0x168] sm:$0xff]
    %v150 = vld [vmem:[#allocation5 + $0x170] sm:$0xff]
    %v151 = vld [vmem:[#allocation5 + $0x178] sm:$0xff]
    %v152 = vld [vmem:[#allocation5 + $0x180] sm:$0xff]
    %v153 = vld [vmem:[#allocation5 + $0x188] sm:$0xff]
    %v154 = vld [vmem:[#allocation5 + $0x190] sm:$0xff]
    %v155 = vld [vmem:[#allocation5 + $0x198] sm:$0xff]
    %v156 = vld [vmem:[#allocation5 + $0x1a0] sm:$0xff]
    %v157 = vld [vmem:[#allocation5 + $0x1a8] sm:$0xff]
    %v158 = vld [vmem:[#allocation5 + $0x1b0] sm:$0xff]
    %v159 = vld [vmem:[#allocation5 + $0x1b8] sm:$0xff]
    %v160 = vld [vmem:[#allocation5 + $0x1c0] sm:$0xff]
    %v161 = vld [vmem:[#allocation5 + $0x1c8] sm:$0xff]
    %v162 = vld [vmem:[#allocation5 + $0x1d0] sm:$0xff]
    %v163 = vld [vmem:[#allocation5 + $0x1d8] sm:$0xff]
    %v164 = vld [vmem:[#allocation5 + $0x1e0] sm:$0xff]
    %v165 = vld [vmem:[#allocation5 + $0x1e8] sm:$0xff]
    %v166 = vld [vmem:[#allocation5 + $0x1f0] sm:$0xff]
    %v167 = vld [vmem:[#allocation5 + $0x1f8] sm:$0xff]
    %v168 = vld [vmem:[#allocation7] sm:$0xf]
    %v170 = vlaneseq
    %v171 = vshrl.u32 %v170, 7
    %v172 = vsub.s32 0, %v171
    %v173 = vrot.slane %v168, %v172
    %v174 = vlaneseq
    %v175 = vshrl.u32 %v174, 7
    %v176 = vsub.s32 1, %v175
    %v177 = vrot.slane %v168, %v176
    %v178 = vlaneseq
    %v179 = vshrl.u32 %v178, 7
    %v180 = vsub.s32 2, %v179
    %v181 = vrot.slane %v168, %v180
    %v182 = vlaneseq
    %v183 = vshrl.u32 %v182, 7
    %v184 = vsub.s32 3, %v183
    %v185 = vrot.slane %v168, %v184
    %190 = vmatprep.subr.mxu0 %v165
    %191 = vmatpush1.msra.mxu0 %v164
    %192 = vmatprep.subr.mxu0 %v161
    %193 = vmatpush1.msra.mxu0 %v160
    %194 = vmatprep.subr.mxu0 %v157
    %195 = vmatpush1.msra.mxu0 %v156
    %196 = vmatprep.subr.mxu0 %v153
    %197 = vmatpush1.msra.mxu0 %v152
    %198 = vmatprep.subr.mxu0 %v149
    %199 = vmatpush1.msra.mxu0 %v148
    %200 = vmatprep.subr.mxu0 %v145
    %201 = vmatpush1.msra.mxu0 %v144
    %202 = vmatprep.subr.mxu0 %v141
    %203 = vmatpush1.msra.mxu0 %v140
    %204 = vmatprep.subr.mxu0 %v137
    %205 = vmatpush1.msra.mxu0 %v136
    %206 = vmatprep.subr.mxu0 %v133
    %207 = vmatpush1.msra.mxu0 %v132
    %208 = vmatprep.subr.mxu0 %v129
    %209 = vmatpush1.msra.mxu0 %v128
    %210 = vmatprep.subr.mxu0 %v125
    %211 = vmatpush1.msra.mxu0 %v124
    %212 = vmatprep.subr.mxu0 %v121
    %213 = vmatpush1.msra.mxu0 %v120
    %214 = vmatprep.subr.mxu0 %v117
    %215 = vmatpush1.msra.mxu0 %v116
    %216 = vmatprep.subr.mxu0 %v113
    %217 = vmatpush1.msra.mxu0 %v112
    %218 = vmatprep.subr.mxu0 %v109
    %219 = vmatpush1.msra.mxu0 %v108
    %220 = vmatprep.subr.mxu0 %v105
    %221 = vmatpush1.msra.mxu0 %v104
    %222 = vmatprep.subr.mxu0 0.0
    %223 = vmatpush2.msra.mxu0 0.0
    %224 = vmatprep.subr.mxu0 0.0
    %225 = vmatpush2.msra.mxu0 0.0
    %226 = vmatprep.subr.mxu0 0.0
    %227 = vmatpush2.msra.mxu0 0.0
    %228 = vmatprep.subr.mxu0 0.0
    %229 = vmatpush2.msra.mxu0 0.0
    %230 = vmatprep.subr.mxu0 0.0
    %231 = vmatpush2.msra.mxu0 0.0
    %232 = vmatprep.subr.mxu0 0.0
    %233 = vmatpush2.msra.mxu0 0.0
    %234 = vmatprep.subr.mxu0 0.0
    %235 = vmatpush2.msra.mxu0 0.0
    %236 = vmatprep.subr.mxu0 0.0
    %237 = vmatpush2.msra.mxu0 0.0
    %238 = vmatprep.subr.mxu0 0.0
    %239 = vmatpush2.msra.mxu0 0.0
    %240 = vmatprep.subr.mxu0 0.0
    %241 = vmatpush2.msra.mxu0 0.0
    %242 = vmatprep.subr.mxu0 0.0
    %243 = vmatpush2.msra.mxu0 0.0
    %244 = vmatprep.subr.mxu0 0.0
    %245 = vmatpush2.msra.mxu0 0.0
    %246 = vmatprep.subr.mxu0 0.0
    %247 = vmatpush2.msra.mxu0 0.0
    %248 = vmatprep.subr.mxu0 0.0
    %249 = vmatpush2.msra.mxu0 0.0
    %250 = vmatprep.subr.mxu0 0.0
    %251 = vmatpush2.msra.mxu0 0.0
    %252 = vmatprep.subr.mxu0 0.0
    %253 = vmatpush2.msra.mxu0 0.0
    %254 = vmatprep.mubr.f32.mxu0 0.0
    %255 = vmatmul.mubr.f32.gmra.mxu0 %v74
    %v256 = vpop.f32.mrf.mxu0
    %v257 = vadd.f32 %v173, %v256
    %v258 = vpop.f32.mrf.mxu0
    %v259 = vadd.f32 %v177, %v258
    %260 = vmatprep.mubr.f32.mxu0 0.0
    %261 = vmatmul.mubr.f32.gmra.mxu0 %v75
    %v262 = vpop.f32.mrf.mxu0
    %v263 = vadd.f32 %v173, %v262
    %v264 = vpop.f32.mrf.mxu0
    %v265 = vadd.f32 %v177, %v264
    %266 = vmatprep.mubr.f32.mxu0 0.0
    %267 = vmatmul.mubr.f32.gmra.mxu0 %v76
    %v268 = vpop.f32.mrf.mxu0
    %v269 = vadd.f32 %v173, %v268
    %v270 = vpop.f32.mrf.mxu0
    %v271 = vadd.f32 %v177, %v270
    %272 = vmatprep.mubr.f32.mxu0 0.0
    %273 = vmatmul.mubr.f32.gmra.mxu0 %v77
    %v274 = vpop.f32.mrf.mxu0
    %v275 = vadd.f32 %v173, %v274
    %v276 = vpop.f32.mrf.mxu0
    %v277 = vadd.f32 %v177, %v276
    %278 = vmatprep.mubr.f32.mxu0 0.0
    %279 = vmatmul.mubr.f32.gmra.mxu0 %v78
    %v280 = vpop.f32.mrf.mxu0
    %v281 = vadd.f32 %v173, %v280
    %v282 = vpop.f32.mrf.mxu0
    %v283 = vadd.f32 %v177, %v282
    %284 = vmatprep.mubr.f32.mxu0 0.0
    %285 = vmatmul.mubr.f32.gmra.mxu0 %v79
    %v286 = vpop.f32.mrf.mxu0
    %v287 = vadd.f32 %v173, %v286
    %v288 = vpop.f32.mrf.mxu0
    %v289 = vadd.f32 %v177, %v288
    %290 = vmatprep.mubr.f32.mxu0 0.0
    %291 = vmatmul.mubr.f32.gmra.mxu0 %v80
    %v292 = vpop.f32.mrf.mxu0
    %v293 = vadd.f32 %v173, %v292
    %v294 = vpop.f32.mrf.mxu0
    %v295 = vadd.f32 %v177, %v294
    %296 = vmatprep.mubr.f32.mxu0 0.0
    %297 = vmatmul.mubr.f32.gmra.mxu0 %v81
    %v298 = vpop.f32.mrf.mxu0
    %v299 = vadd.f32 %v173, %v298
    %v300 = vpop.f32.mrf.mxu0
    %v301 = vadd.f32 %v177, %v300
    %302 = vmatprep.mubr.f32.mxu0 0.0
    %303 = vmatmul.mubr.f32.gmra.mxu0 %v82
    %v304 = vpop.f32.mrf.mxu0
    %v305 = vadd.f32 %v173, %v304
    %v306 = vpop.f32.mrf.mxu0
    %v307 = vadd.f32 %v177, %v306
    %308 = vmatprep.mubr.f32.mxu0 0.0
    %309 = vmatmul.mubr.f32.gmra.mxu0 %v83
    %v310 = vpop.f32.mrf.mxu0
    %v311 = vadd.f32 %v173, %v310
    %v312 = vpop.f32.mrf.mxu0
    %v313 = vadd.f32 %v177, %v312
    %314 = vmatprep.mubr.f32.mxu0 0.0
    %315 = vmatmul.mubr.f32.gmra.mxu0 %v84
    %v316 = vpop.f32.mrf.mxu0
    %v317 = vadd.f32 %v173, %v316
    %v318 = vpop.f32.mrf.mxu0
    %v319 = vadd.f32 %v177, %v318
    %320 = vmatprep.mubr.f32.mxu0 0.0
    %321 = vmatmul.mubr.f32.gmra.mxu0 %v85
    %v322 = vpop.f32.mrf.mxu0
    %v323 = vadd.f32 %v173, %v322
    %v324 = vpop.f32.mrf.mxu0
    %v325 = vadd.f32 %v177, %v324
    %326 = vmatprep.mubr.f32.mxu0 0.0
    %327 = vmatmul.mubr.f32.gmra.mxu0 %v86
    %v328 = vpop.f32.mrf.mxu0
    %v329 = vadd.f32 %v173, %v328
    %v330 = vpop.f32.mrf.mxu0
    %v331 = vadd.f32 %v177, %v330
    %332 = vmatprep.mubr.f32.mxu0 0.0
    %333 = vmatmul.mubr.f32.gmra.mxu0 %v87
    %v334 = vpop.f32.mrf.mxu0
    %v335 = vadd.f32 %v173, %v334
    %v336 = vpop.f32.mrf.mxu0
    %v337 = vadd.f32 %v177, %v336
    %338 = vmatprep.mubr.f32.mxu0 0.0
    %339 = vmatmul.mubr.f32.gmra.mxu0 %v88
    %v340 = vpop.f32.mrf.mxu0
    %v341 = vadd.f32 %v173, %v340
    %v342 = vpop.f32.mrf.mxu0
    %v343 = vadd.f32 %v177, %v342
    %344 = vmatprep.mubr.f32.mxu0 0.0
    %345 = vmatmul.mubr.f32.gmra.mxu0 %v89
    %v346 = vpop.f32.mrf.mxu0
    %v347 = vadd.f32 %v173, %v346
    %v348 = vpop.f32.mrf.mxu0
    %v349 = vadd.f32 %v177, %v348
    %350 = vmatprep.mubr.f32.mxu0 0.0
    %351 = vmatmul.mubr.f32.gmra.mxu0 %v90
    %v352 = vpop.f32.mrf.mxu0
    %v353 = vadd.f32 %v173, %v352
    %v354 = vpop.f32.mrf.mxu0
    %v355 = vadd.f32 %v177, %v354
    %356 = vmatprep.mubr.f32.mxu0 0.0
    %357 = vmatmul.mubr.f32.gmra.mxu0 %v91
    %v358 = vpop.f32.mrf.mxu0
    %v359 = vadd.f32 %v173, %v358
    %v360 = vpop.f32.mrf.mxu0
    %v361 = vadd.f32 %v177, %v360
    %362 = vmatprep.mubr.f32.mxu0 0.0
    %363 = vmatmul.mubr.f32.gmra.mxu0 %v92
    %v364 = vpop.f32.mrf.mxu0
    %v365 = vadd.f32 %v173, %v364
    %v366 = vpop.f32.mrf.mxu0
    %v367 = vadd.f32 %v177, %v366
    %368 = vmatprep.mubr.f32.mxu0 0.0
    %369 = vmatmul.mubr.f32.gmra.mxu0 %v93
    %v370 = vpop.f32.mrf.mxu0
    %v371 = vadd.f32 %v173, %v370
    %v372 = vpop.f32.mrf.mxu0
    %v373 = vadd.f32 %v177, %v372
    %374 = vmatprep.mubr.f32.mxu0 0.0
    %375 = vmatmul.mubr.f32.gmra.mxu0 %v94
    %v376 = vpop.f32.mrf.mxu0
    %v377 = vadd.f32 %v173, %v376
    %v378 = vpop.f32.mrf.mxu0
    %v379 = vadd.f32 %v177, %v378
    %380 = vmatprep.mubr.f32.mxu0 0.0
    %381 = vmatmul.mubr.f32.gmra.mxu0 %v95
    %v382 = vpop.f32.mrf.mxu0
    %v383 = vadd.f32 %v173, %v382
    %v384 = vpop.f32.mrf.mxu0
    %v385 = vadd.f32 %v177, %v384
    %386 = vmatprep.mubr.f32.mxu0 0.0
    %387 = vmatmul.mubr.f32.gmra.mxu0 %v96
    %v388 = vpop.f32.mrf.mxu0
    %v389 = vadd.f32 %v173, %v388
    %v390 = vpop.f32.mrf.mxu0
    %v391 = vadd.f32 %v177, %v390
    %392 = vmatprep.mubr.f32.mxu0 0.0
    %393 = vmatmul.mubr.f32.gmra.mxu0 %v97
    %v394 = vpop.f32.mrf.mxu0
    %v395 = vadd.f32 %v173, %v394
    %v396 = vpop.f32.mrf.mxu0
    %v397 = vadd.f32 %v177, %v396
    %398 = vmatprep.mubr.f32.mxu0 0.0
    %399 = vmatmul.mubr.f32.gmra.mxu0 %v98
    %v400 = vpop.f32.mrf.mxu0
    %v401 = vadd.f32 %v173, %v400
    %v402 = vpop.f32.mrf.mxu0
    %v403 = vadd.f32 %v177, %v402
    %404 = vmatprep.mubr.f32.mxu0 0.0
    %405 = vmatmul.mubr.f32.gmra.mxu0 %v99
    %v406 = vpop.f32.mrf.mxu0
    %v407 = vadd.f32 %v173, %v406
    %v408 = vpop.f32.mrf.mxu0
    %v409 = vadd.f32 %v177, %v408
    %410 = vmatprep.mubr.f32.mxu0 0.0
    %411 = vmatmul.mubr.f32.gmra.mxu0 %v100
    %v412 = vpop.f32.mrf.mxu0
    %v413 = vadd.f32 %v173, %v412
    %v414 = vpop.f32.mrf.mxu0
    %v415 = vadd.f32 %v177, %v414
    %416 = vmatprep.mubr.f32.mxu0 0.0
    %417 = vmatmul.mubr.f32.gmra.mxu0 %v101
    %v418 = vpop.f32.mrf.mxu0
    %v419 = vadd.f32 %v173, %v418
    %v420 = vpop.f32.mrf.mxu0
    %v421 = vadd.f32 %v177, %v420
    %422 = vmatprep.mubr.f32.mxu0 0.0
    %423 = vmatmul.mubr.f32.gmra.mxu0 %v102
    %v424 = vpop.f32.mrf.mxu0
    %v425 = vadd.f32 %v173, %v424
    %v426 = vpop.f32.mrf.mxu0
    %v427 = vadd.f32 %v177, %v426
    %428 = vmatprep.mubr.f32.mxu0 0.0
    %429 = vmatmul.mubr.f32.gmra.mxu0 %v103
    %v430 = vpop.f32.mrf.mxu0
    %v431 = vadd.f32 %v173, %v430
    %v432 = vpop.f32.mrf.mxu0
    %v433 = vadd.f32 %v177, %v432
    %434 = vdwg.mxu0
    %435 = vmatprep.subr.mxu0 %v167
    %436 = vmatpush1.msra.mxu0 %v166
    %437 = vmatprep.subr.mxu0 %v163
    %438 = vmatpush1.msra.mxu0 %v162
    %439 = vmatprep.subr.mxu0 %v159
    %440 = vmatpush1.msra.mxu0 %v158
    %441 = vmatprep.subr.mxu0 %v155
    %442 = vmatpush1.msra.mxu0 %v154
    %443 = vmatprep.subr.mxu0 %v151
    %444 = vmatpush1.msra.mxu0 %v150
    %445 = vmatprep.subr.mxu0 %v147
    %446 = vmatpush1.msra.mxu0 %v146
    %447 = vmatprep.subr.mxu0 %v143
    %448 = vmatpush1.msra.mxu0 %v142
    %449 = vmatprep.subr.mxu0 %v139
    %450 = vmatpush1.msra.mxu0 %v138
    %451 = vmatprep.subr.mxu0 %v135
    %452 = vmatpush1.msra.mxu0 %v134
    %453 = vmatprep.subr.mxu0 %v131
    %454 = vmatpush1.msra.mxu0 %v130
    %455 = vmatprep.subr.mxu0 %v127
    %456 = vmatpush1.msra.mxu0 %v126
    %457 = vmatprep.subr.mxu0 %v123
    %458 = vmatpush1.msra.mxu0 %v122
    %459 = vmatprep.subr.mxu0 %v119
    %460 = vmatpush1.msra.mxu0 %v118
    %461 = vmatprep.subr.mxu0 %v115
    %462 = vmatpush1.msra.mxu0 %v114
    %463 = vmatprep.subr.mxu0 %v111
    %464 = vmatpush1.msra.mxu0 %v110
    %465 = vmatprep.subr.mxu0 %v107
    %466 = vmatpush1.msra.mxu0 %v106
    %467 = vmatprep.subr.mxu0 0.0
    %468 = vmatpush2.msra.mxu0 0.0
    %469 = vmatprep.subr.mxu0 0.0
    %470 = vmatpush2.msra.mxu0 0.0
    %471 = vmatprep.subr.mxu0 0.0
    %472 = vmatpush2.msra.mxu0 0.0
    %473 = vmatprep.subr.mxu0 0.0
    %474 = vmatpush2.msra.mxu0 0.0
    %475 = vmatprep.subr.mxu0 0.0
    %476 = vmatpush2.msra.mxu0 0.0
    %477 = vmatprep.subr.mxu0 0.0
    %478 = vmatpush2.msra.mxu0 0.0
    %479 = vmatprep.subr.mxu0 0.0
    %480 = vmatpush2.msra.mxu0 0.0
    %481 = vmatprep.subr.mxu0 0.0
    %482 = vmatpush2.msra.mxu0 0.0
    %483 = vmatprep.subr.mxu0 0.0
    %484 = vmatpush2.msra.mxu0 0.0
    %485 = vmatprep.subr.mxu0 0.0
    %486 = vmatpush2.msra.mxu0 0.0
    %487 = vmatprep.subr.mxu0 0.0
    %488 = vmatpush2.msra.mxu0 0.0
    %489 = vmatprep.subr.mxu0 0.0
    %490 = vmatpush2.msra.mxu0 0.0
    %491 = vmatprep.subr.mxu0 0.0
    %492 = vmatpush2.msra.mxu0 0.0
    %493 = vmatprep.subr.mxu0 0.0
    %494 = vmatpush2.msra.mxu0 0.0
    %495 = vmatprep.subr.mxu0 0.0
    %496 = vmatpush2.msra.mxu0 0.0
    %497 = vmatprep.subr.mxu0 0.0
    %498 = vmatpush2.msra.mxu0 0.0
    %499 = vmatprep.mubr.f32.mxu0 0.0
    %500 = vmatmul.mubr.f32.gmra.mxu0 %v74
    %v501 = vpop.f32.mrf.mxu0
    %v502 = vadd.f32 %v181, %v501
    %v503 = vpop.f32.mrf.mxu0
    %v504 = vadd.f32 %v185, %v503
    %505 = vmatprep.mubr.f32.mxu0 0.0
    %506 = vmatmul.mubr.f32.gmra.mxu0 %v75
    %v507 = vpop.f32.mrf.mxu0
    %v508 = vadd.f32 %v181, %v507
    %v509 = vpop.f32.mrf.mxu0
    %v510 = vadd.f32 %v185, %v509
    %511 = vmatprep.mubr.f32.mxu0 0.0
    %512 = vmatmul.mubr.f32.gmra.mxu0 %v76
    %v513 = vpop.f32.mrf.mxu0
    %v514 = vadd.f32 %v181, %v513
    %v515 = vpop.f32.mrf.mxu0
    %v516 = vadd.f32 %v185, %v515
    %517 = vmatprep.mubr.f32.mxu0 0.0
    %518 = vmatmul.mubr.f32.gmra.mxu0 %v77
    %v519 = vpop.f32.mrf.mxu0
    %v520 = vadd.f32 %v181, %v519
    %v521 = vpop.f32.mrf.mxu0
    %v522 = vadd.f32 %v185, %v521
    %523 = vmatprep.mubr.f32.mxu0 0.0
    %524 = vmatmul.mubr.f32.gmra.mxu0 %v78
    %v525 = vpop.f32.mrf.mxu0
    %v526 = vadd.f32 %v181, %v525
    %v527 = vpop.f32.mrf.mxu0
    %v528 = vadd.f32 %v185, %v527
    %529 = vmatprep.mubr.f32.mxu0 0.0
    %530 = vmatmul.mubr.f32.gmra.mxu0 %v79
    %v531 = vpop.f32.mrf.mxu0
    %v532 = vadd.f32 %v181, %v531
    %v533 = vpop.f32.mrf.mxu0
    %v534 = vadd.f32 %v185, %v533
    %535 = vmatprep.mubr.f32.mxu0 0.0
    %536 = vmatmul.mubr.f32.gmra.mxu0 %v80
    %v537 = vpop.f32.mrf.mxu0
    %v538 = vadd.f32 %v181, %v537
    %v539 = vpop.f32.mrf.mxu0
    %v540 = vadd.f32 %v185, %v539
    %541 = vmatprep.mubr.f32.mxu0 0.0
    %542 = vmatmul.mubr.f32.gmra.mxu0 %v81
    %v543 = vpop.f32.mrf.mxu0
    %v544 = vadd.f32 %v181, %v543
    %v545 = vpop.f32.mrf.mxu0
    %v546 = vadd.f32 %v185, %v545
    %547 = vmatprep.mubr.f32.mxu0 0.0
    %548 = vmatmul.mubr.f32.gmra.mxu0 %v82
    %v549 = vpop.f32.mrf.mxu0
    %v550 = vadd.f32 %v181, %v549
    %v551 = vpop.f32.mrf.mxu0
    %v552 = vadd.f32 %v185, %v551
    %553 = vmatprep.mubr.f32.mxu0 0.0
    %554 = vmatmul.mubr.f32.gmra.mxu0 %v83
    %v555 = vpop.f32.mrf.mxu0
    %v556 = vadd.f32 %v181, %v555
    %v557 = vpop.f32.mrf.mxu0
    %v558 = vadd.f32 %v185, %v557
    %559 = vmatprep.mubr.f32.mxu0 0.0
    %560 = vmatmul.mubr.f32.gmra.mxu0 %v84
    %v561 = vpop.f32.mrf.mxu0
    %v562 = vadd.f32 %v181, %v561
    %v563 = vpop.f32.mrf.mxu0
    %v564 = vadd.f32 %v185, %v563
    %565 = vmatprep.mubr.f32.mxu0 0.0
    %566 = vmatmul.mubr.f32.gmra.mxu0 %v85
    %v567 = vpop.f32.mrf.mxu0
    %v568 = vadd.f32 %v181, %v567
    %v569 = vpop.f32.mrf.mxu0
    %v570 = vadd.f32 %v185, %v569
    %571 = vmatprep.mubr.f32.mxu0 0.0
    %572 = vmatmul.mubr.f32.gmra.mxu0 %v86
    %v573 = vpop.f32.mrf.mxu0
    %v574 = vadd.f32 %v181, %v573
    %v575 = vpop.f32.mrf.mxu0
    %v576 = vadd.f32 %v185, %v575
    %577 = vmatprep.mubr.f32.mxu0 0.0
    %578 = vmatmul.mubr.f32.gmra.mxu0 %v87
    %v579 = vpop.f32.mrf.mxu0
    %v580 = vadd.f32 %v181, %v579
    %v581 = vpop.f32.mrf.mxu0
    %v582 = vadd.f32 %v185, %v581
    %583 = vmatprep.mubr.f32.mxu0 0.0
    %584 = vmatmul.mubr.f32.gmra.mxu0 %v88
    %v585 = vpop.f32.mrf.mxu0
    %v586 = vadd.f32 %v181, %v585
    %v587 = vpop.f32.mrf.mxu0
    %v588 = vadd.f32 %v185, %v587
    %589 = vmatprep.mubr.f32.mxu0 0.0
    %590 = vmatmul.mubr.f32.gmra.mxu0 %v89
    %v591 = vpop.f32.mrf.mxu0
    %v592 = vadd.f32 %v181, %v591
    %v593 = vpop.f32.mrf.mxu0
    %v594 = vadd.f32 %v185, %v593
    %595 = vmatprep.mubr.f32.mxu0 0.0
    %596 = vmatmul.mubr.f32.gmra.mxu0 %v90
    %v597 = vpop.f32.mrf.mxu0
    %v598 = vadd.f32 %v181, %v597
    %v599 = vpop.f32.mrf.mxu0
    %v600 = vadd.f32 %v185, %v599
    %601 = vmatprep.mubr.f32.mxu0 0.0
    %602 = vmatmul.mubr.f32.gmra.mxu0 %v91
    %v603 = vpop.f32.mrf.mxu0
    %v604 = vadd.f32 %v181, %v603
    %v605 = vpop.f32.mrf.mxu0
    %v606 = vadd.f32 %v185, %v605
    %607 = vmatprep.mubr.f32.mxu0 0.0
    %608 = vmatmul.mubr.f32.gmra.mxu0 %v92
    %v609 = vpop.f32.mrf.mxu0
    %v610 = vadd.f32 %v181, %v609
    %v611 = vpop.f32.mrf.mxu0
    %v612 = vadd.f32 %v185, %v611
    %613 = vmatprep.mubr.f32.mxu0 0.0
    %614 = vmatmul.mubr.f32.gmra.mxu0 %v93
    %v615 = vpop.f32.mrf.mxu0
    %v616 = vadd.f32 %v181, %v615
    %v617 = vpop.f32.mrf.mxu0
    %v618 = vadd.f32 %v185, %v617
    %619 = vmatprep.mubr.f32.mxu0 0.0
    %620 = vmatmul.mubr.f32.gmra.mxu0 %v94
    %v621 = vpop.f32.mrf.mxu0
    %v622 = vadd.f32 %v181, %v621
    %v623 = vpop.f32.mrf.mxu0
    %v624 = vadd.f32 %v185, %v623
    %625 = vmatprep.mubr.f32.mxu0 0.0
    %626 = vmatmul.mubr.f32.gmra.mxu0 %v95
    %v627 = vpop.f32.mrf.mxu0
    %v628 = vadd.f32 %v181, %v627
    %v629 = vpop.f32.mrf.mxu0
    %v630 = vadd.f32 %v185, %v629
    %631 = vmatprep.mubr.f32.mxu0 0.0
    %632 = vmatmul.mubr.f32.gmra.mxu0 %v96
    %v633 = vpop.f32.mrf.mxu0
    %v634 = vadd.f32 %v181, %v633
    %v635 = vpop.f32.mrf.mxu0
    %v636 = vadd.f32 %v185, %v635
    %637 = vmatprep.mubr.f32.mxu0 0.0
    %638 = vmatmul.mubr.f32.gmra.mxu0 %v97
    %v639 = vpop.f32.mrf.mxu0
    %v640 = vadd.f32 %v181, %v639
    %v641 = vpop.f32.mrf.mxu0
    %v642 = vadd.f32 %v185, %v641
    %643 = vmatprep.mubr.f32.mxu0 0.0
    %644 = vmatmul.mubr.f32.gmra.mxu0 %v98
    %v645 = vpop.f32.mrf.mxu0
    %v646 = vadd.f32 %v181, %v645
    %v647 = vpop.f32.mrf.mxu0
    %v648 = vadd.f32 %v185, %v647
    %649 = vmatprep.mubr.f32.mxu0 0.0
    %650 = vmatmul.mubr.f32.gmra.mxu0 %v99
    %v651 = vpop.f32.mrf.mxu0
    %v652 = vadd.f32 %v181, %v651
    %v653 = vpop.f32.mrf.mxu0
    %v654 = vadd.f32 %v185, %v653
    %655 = vmatprep.mubr.f32.mxu0 0.0
    %656 = vmatmul.mubr.f32.gmra.mxu0 %v100
    %v657 = vpop.f32.mrf.mxu0
    %v658 = vadd.f32 %v181, %v657
    %v659 = vpop.f32.mrf.mxu0
    %v660 = vadd.f32 %v185, %v659
    %661 = vmatprep.mubr.f32.mxu0 0.0
    %662 = vmatmul.mubr.f32.gmra.mxu0 %v101
    %v663 = vpop.f32.mrf.mxu0
    %v664 = vadd.f32 %v181, %v663
    %v665 = vpop.f32.mrf.mxu0
    %v666 = vadd.f32 %v185, %v665
    %667 = vmatprep.mubr.f32.mxu0 0.0
    %668 = vmatmul.mubr.f32.gmra.mxu0 %v102
    %v669 = vpop.f32.mrf.mxu0
    %v670 = vadd.f32 %v181, %v669
    %v671 = vpop.f32.mrf.mxu0
    %v672 = vadd.f32 %v185, %v671
    %673 = vmatprep.mubr.f32.mxu0 0.0
    %674 = vmatmul.mubr.f32.gmra.mxu0 %v103
    %v675 = vpop.f32.mrf.mxu0
    %v676 = vadd.f32 %v181, %v675
    %v677 = vpop.f32.mrf.mxu0
    %v678 = vadd.f32 %v185, %v677
    %679 = vdwg.mxu0
    %v680 = vmax.f32 %v257, 0.0
    %v681 = vmax.f32 %v259, 0.0
    %v682 = vmax.f32 %v502, 0.0
    %v683 = vmax.f32 %v504, 0.0
    %v684 = vmax.f32 %v263, 0.0
    %v685 = vmax.f32 %v265, 0.0
    %v686 = vmax.f32 %v508, 0.0
    %v687 = vmax.f32 %v510, 0.0
    %v688 = vmax.f32 %v269, 0.0
    %v689 = vmax.f32 %v271, 0.0
    %v690 = vmax.f32 %v514, 0.0
    %v691 = vmax.f32 %v516, 0.0
    %v692 = vmax.f32 %v275, 0.0
    %v693 = vmax.f32 %v277, 0.0
    %v694 = vmax.f32 %v520, 0.0
    %v695 = vmax.f32 %v522, 0.0
    %v696 = vmax.f32 %v281, 0.0
    %v697 = vmax.f32 %v283, 0.0
    %v698 = vmax.f32 %v526, 0.0
    %v699 = vmax.f32 %v528, 0.0
    %v700 = vmax.f32 %v287, 0.0
    %v701 = vmax.f32 %v289, 0.0
    %v702 = vmax.f32 %v532, 0.0
    %v703 = vmax.f32 %v534, 0.0
    %v704 = vmax.f32 %v293, 0.0
    %v705 = vmax.f32 %v295, 0.0
    %v706 = vmax.f32 %v538, 0.0
    %v707 = vmax.f32 %v540, 0.0
    %v708 = vmax.f32 %v299, 0.0
    %v709 = vmax.f32 %v301, 0.0
    %v710 = vmax.f32 %v544, 0.0
    %v711 = vmax.f32 %v546, 0.0
    %v712 = vmax.f32 %v305, 0.0
    %v713 = vmax.f32 %v307, 0.0
    %v714 = vmax.f32 %v550, 0.0
    %v715 = vmax.f32 %v552, 0.0
    %v716 = vmax.f32 %v311, 0.0
    %v717 = vmax.f32 %v313, 0.0
    %v718 = vmax.f32 %v556, 0.0
    %v719 = vmax.f32 %v558, 0.0
    %v720 = vmax.f32 %v317, 0.0
    %v721 = vmax.f32 %v319, 0.0
    %v722 = vmax.f32 %v562, 0.0
    %v723 = vmax.f32 %v564, 0.0
    %v724 = vmax.f32 %v323, 0.0
    %v725 = vmax.f32 %v325, 0.0
    %v726 = vmax.f32 %v568, 0.0
    %v727 = vmax.f32 %v570, 0.0
    %v728 = vmax.f32 %v329, 0.0
    %v729 = vmax.f32 %v331, 0.0
    %v730 = vmax.f32 %v574, 0.0
    %v731 = vmax.f32 %v576, 0.0
    %v732 = vmax.f32 %v335, 0.0
    %v733 = vmax.f32 %v337, 0.0
    %v734 = vmax.f32 %v580, 0.0
    %v735 = vmax.f32 %v582, 0.0
    %v736 = vmax.f32 %v341, 0.0
    %v737 = vmax.f32 %v343, 0.0
    %v738 = vmax.f32 %v586, 0.0
    %v739 = vmax.f32 %v588, 0.0
    %v740 = vmax.f32 %v347, 0.0
    %v741 = vmax.f32 %v349, 0.0
    %v742 = vmax.f32 %v592, 0.0
    %v743 = vmax.f32 %v594, 0.0
    %v744 = vmax.f32 %v353, 0.0
    %v745 = vmax.f32 %v355, 0.0
    %v746 = vmax.f32 %v598, 0.0
    %v747 = vmax.f32 %v600, 0.0
    %v748 = vmax.f32 %v359, 0.0
    %v749 = vmax.f32 %v361, 0.0
    %v750 = vmax.f32 %v604, 0.0
    %v751 = vmax.f32 %v606, 0.0
    %v752 = vmax.f32 %v365, 0.0
    %v753 = vmax.f32 %v367, 0.0
    %v754 = vmax.f32 %v610, 0.0
    %v755 = vmax.f32 %v612, 0.0
    %v756 = vmax.f32 %v371, 0.0
    %v757 = vmax.f32 %v373, 0.0
    %v758 = vmax.f32 %v616, 0.0
    %v759 = vmax.f32 %v618, 0.0
    %v760 = vmax.f32 %v377, 0.0
    %v761 = vmax.f32 %v379, 0.0
    %v762 = vmax.f32 %v622, 0.0
    %v763 = vmax.f32 %v624, 0.0
    %v764 = vmax.f32 %v383, 0.0
    %v765 = vmax.f32 %v385, 0.0
    %v766 = vmax.f32 %v628, 0.0
    %v767 = vmax.f32 %v630, 0.0
    %v768 = vmax.f32 %v389, 0.0
    %v769 = vmax.f32 %v391, 0.0
    %v770 = vmax.f32 %v634, 0.0
    %v771 = vmax.f32 %v636, 0.0
    %v772 = vmax.f32 %v395, 0.0
    %v773 = vmax.f32 %v397, 0.0
    %v774 = vmax.f32 %v640, 0.0
    %v775 = vmax.f32 %v642, 0.0
    %v776 = vmax.f32 %v401, 0.0
    %v777 = vmax.f32 %v403, 0.0
    %v778 = vmax.f32 %v646, 0.0
    %v779 = vmax.f32 %v648, 0.0
    %v780 = vmax.f32 %v407, 0.0
    %v781 = vmax.f32 %v409, 0.0
    %v782 = vmax.f32 %v652, 0.0
    %v783 = vmax.f32 %v654, 0.0
    %v784 = vmax.f32 %v413, 0.0
    %v785 = vmax.f32 %v415, 0.0
    %v786 = vmax.f32 %v658, 0.0
    %v787 = vmax.f32 %v660, 0.0
    %v788 = vmax.f32 %v419, 0.0
    %v789 = vmax.f32 %v421, 0.0
    %v790 = vmax.f32 %v664, 0.0
    %v791 = vmax.f32 %v666, 0.0
    %v792 = vmax.f32 %v425, 0.0
    %v793 = vmax.f32 %v427, 0.0
    %v794 = vmax.f32 %v670, 0.0
    %v795 = vmax.f32 %v672, 0.0
    %v796 = vmax.f32 %v431, 0.0
    %v797 = vmax.f32 %v433, 0.0
    %v798 = vmax.f32 %v676, 0.0
    %v799 = vmax.f32 %v678, 0.0
    %v800 = vld [vmem:[#allocation8] sm:$0xff]
    %v801 = vld [vmem:[#allocation8 + $0x8] sm:$0xff]
    %v802 = vld [vmem:[#allocation8 + $0x10] sm:$0xff]
    %v803 = vld [vmem:[#allocation8 + $0x18] sm:$0xff]
    %v804 = vld [vmem:[#allocation8 + $0x20] sm:$0xff]
    %v805 = vld [vmem:[#allocation8 + $0x28] sm:$0xff]
    %v806 = vld [vmem:[#allocation8 + $0x30] sm:$0xff]
    %v807 = vld [vmem:[#allocation8 + $0x38] sm:$0xff]
    %v808 = vld [vmem:[#allocation8 + $0x40] sm:$0xff]
    %v809 = vld [vmem:[#allocation8 + $0x48] sm:$0xff]
    %v810 = vld [vmem:[#allocation8 + $0x50] sm:$0xff]
    %v811 = vld [vmem:[#allocation8 + $0x58] sm:$0xff]
    %v812 = vld [vmem:[#allocation8 + $0x60] sm:$0xff]
    %v813 = vld [vmem:[#allocation8 + $0x68] sm:$0xff]
    %v814 = vld [vmem:[#allocation8 + $0x70] sm:$0xff]
    %v815 = vld [vmem:[#allocation8 + $0x78] sm:$0xff]
    %v816 = vld [vmem:[#allocation8 + $0x80] sm:$0xff]
    %v817 = vld [vmem:[#allocation8 + $0x88] sm:$0xff]
    %v818 = vld [vmem:[#allocation8 + $0x90] sm:$0xff]
    %v819 = vld [vmem:[#allocation8 + $0x98] sm:$0xff]
    %v820 = vld [vmem:[#allocation8 + $0xa0] sm:$0xff]
    %v821 = vld [vmem:[#allocation8 + $0xa8] sm:$0xff]
    %v822 = vld [vmem:[#allocation8 + $0xb0] sm:$0xff]
    %v823 = vld [vmem:[#allocation8 + $0xb8] sm:$0xff]
    %v824 = vld [vmem:[#allocation8 + $0xc0] sm:$0xff]
    %v825 = vld [vmem:[#allocation8 + $0xc8] sm:$0xff]
    %v826 = vld [vmem:[#allocation8 + $0xd0] sm:$0xff]
    %v827 = vld [vmem:[#allocation8 + $0xd8] sm:$0xff]
    %v828 = vld [vmem:[#allocation8 + $0xe0] sm:$0xff]
    %v829 = vld [vmem:[#allocation8 + $0xe8] sm:$0xff]
    %v830 = vld [vmem:[#allocation8 + $0xf0] sm:$0xff]
    %v831 = vld [vmem:[#allocation8 + $0xf8] sm:$0xff]
    %v832 = vld [vmem:[#allocation8 + $0x100] sm:$0xff]
    %v833 = vld [vmem:[#allocation8 + $0x108] sm:$0xff]
    %v834 = vld [vmem:[#allocation8 + $0x110] sm:$0xff]
    %v835 = vld [vmem:[#allocation8 + $0x118] sm:$0xff]
    %v836 = vld [vmem:[#allocation8 + $0x120] sm:$0xff]
    %v837 = vld [vmem:[#allocation8 + $0x128] sm:$0xff]
    %v838 = vld [vmem:[#allocation8 + $0x130] sm:$0xff]
    %v839 = vld [vmem:[#allocation8 + $0x138] sm:$0xff]
    %v840 = vld [vmem:[#allocation8 + $0x140] sm:$0xff]
    %v841 = vld [vmem:[#allocation8 + $0x148] sm:$0xff]
    %v842 = vld [vmem:[#allocation8 + $0x150] sm:$0xff]
    %v843 = vld [vmem:[#allocation8 + $0x158] sm:$0xff]
    %v844 = vld [vmem:[#allocation8 + $0x160] sm:$0xff]
    %v845 = vld [vmem:[#allocation8 + $0x168] sm:$0xff]
    %v846 = vld [vmem:[#allocation8 + $0x170] sm:$0xff]
    %v847 = vld [vmem:[#allocation8 + $0x178] sm:$0xff]
    %v848 = vld [vmem:[#allocation8 + $0x180] sm:$0xff]
    %v849 = vld [vmem:[#allocation8 + $0x188] sm:$0xff]
    %v850 = vld [vmem:[#allocation8 + $0x190] sm:$0xff]
    %v851 = vld [vmem:[#allocation8 + $0x198] sm:$0xff]
    %v852 = vld [vmem:[#allocation8 + $0x1a0] sm:$0xff]
    %v853 = vld [vmem:[#allocation8 + $0x1a8] sm:$0xff]
    %v854 = vld [vmem:[#allocation8 + $0x1b0] sm:$0xff]
    %v855 = vld [vmem:[#allocation8 + $0x1b8] sm:$0xff]
    %v856 = vld [vmem:[#allocation8 + $0x1c0] sm:$0xff]
    %v857 = vld [vmem:[#allocation8 + $0x1c8] sm:$0xff]
    %v858 = vld [vmem:[#allocation8 + $0x1d0] sm:$0xff]
    %v859 = vld [vmem:[#allocation8 + $0x1d8] sm:$0xff]
    %v860 = vld [vmem:[#allocation8 + $0x1e0] sm:$0xff]
    %v861 = vld [vmem:[#allocation8 + $0x1e8] sm:$0xff]
    %v862 = vld [vmem:[#allocation8 + $0x1f0] sm:$0xff]
    %v863 = vld [vmem:[#allocation8 + $0x1f8] sm:$0xff]
    %v864 = vld [vmem:[%s4] sm:$0x1]
    %v866 = vlaneseq
    %v867 = vshrl.u32 %v866, 7
    %v868 = vsub.s32 0, %v867
    %v869 = vrot.slane %v864, %v868
    %871 = vmatprep.subr.mxu0 0.0
    %872 = vmatpush1.msra.mxu0 %v815
    %873 = vmatprep.subr.mxu0 0.0
    %874 = vmatpush1.msra.mxu0 %v814
    %875 = vmatprep.subr.mxu0 0.0
    %876 = vmatpush1.msra.mxu0 %v813
    %877 = vmatprep.subr.mxu0 0.0
    %878 = vmatpush1.msra.mxu0 %v812
    %879 = vmatprep.subr.mxu0 0.0
    %880 = vmatpush1.msra.mxu0 %v811
    %881 = vmatprep.subr.mxu0 0.0
    %882 = vmatpush1.msra.mxu0 %v810
    %883 = vmatprep.subr.mxu0 0.0
    %884 = vmatpush1.msra.mxu0 %v809
    %885 = vmatprep.subr.mxu0 0.0
    %886 = vmatpush1.msra.mxu0 %v808
    %887 = vmatprep.subr.mxu0 0.0
    %888 = vmatpush1.msra.mxu0 %v807
    %889 = vmatprep.subr.mxu0 0.0
    %890 = vmatpush1.msra.mxu0 %v806
    %891 = vmatprep.subr.mxu0 0.0
    %892 = vmatpush1.msra.mxu0 %v805
    %893 = vmatprep.subr.mxu0 0.0
    %894 = vmatpush1.msra.mxu0 %v804
    %895 = vmatprep.subr.mxu0 0.0
    %896 = vmatpush1.msra.mxu0 %v803
    %897 = vmatprep.subr.mxu0 0.0
    %898 = vmatpush1.msra.mxu0 %v802
    %899 = vmatprep.subr.mxu0 0.0
    %900 = vmatpush1.msra.mxu0 %v801
    %901 = vmatprep.subr.mxu0 0.0
    %902 = vmatpush1.msra.mxu0 %v800
    %903 = vmatprep.subr.mxu0 0.0
    %904 = vmatpush2.msra.mxu0 %v831
    %905 = vmatprep.subr.mxu0 0.0
    %906 = vmatpush2.msra.mxu0 %v830
    %907 = vmatprep.subr.mxu0 0.0
    %908 = vmatpush2.msra.mxu0 %v829
    %909 = vmatprep.subr.mxu0 0.0
    %910 = vmatpush2.msra.mxu0 %v828
    %911 = vmatprep.subr.mxu0 0.0
    %912 = vmatpush2.msra.mxu0 %v827
    %913 = vmatprep.subr.mxu0 0.0
    %914 = vmatpush2.msra.mxu0 %v826
    %915 = vmatprep.subr.mxu0 0.0
    %916 = vmatpush2.msra.mxu0 %v825
    %917 = vmatprep.subr.mxu0 0.0
    %918 = vmatpush2.msra.mxu0 %v824
    %919 = vmatprep.subr.mxu0 0.0
    %920 = vmatpush2.msra.mxu0 %v823
    %921 = vmatprep.subr.mxu0 0.0
    %922 = vmatpush2.msra.mxu0 %v822
    %923 = vmatprep.subr.mxu0 0.0
    %924 = vmatpush2.msra.mxu0 %v821
    %925 = vmatprep.subr.mxu0 0.0
    %926 = vmatpush2.msra.mxu0 %v820
    %927 = vmatprep.subr.mxu0 0.0
    %928 = vmatpush2.msra.mxu0 %v819
    %929 = vmatprep.subr.mxu0 0.0
    %930 = vmatpush2.msra.mxu0 %v818
    %931 = vmatprep.subr.mxu0 0.0
    %932 = vmatpush2.msra.mxu0 %v817
    %933 = vmatprep.subr.mxu0 0.0
    %934 = vmatpush2.msra.mxu0 %v816
    %935 = vmatprep.mubr.f32.mxu0 %v681
    %936 = vmatmul.mubr.f32.gmra.mxu0 %v680
    %v937 = vpop.f32.mrf.mxu0
    %v938 = vadd.f32 %v869, %v937
    %v939 = vpop.f32.mrf.mxu0
    %940 = vmatprep.mubr.f32.mxu0 %v685
    %941 = vmatmul.mubr.f32.gmra.mxu0 %v684
    %v942 = vpop.f32.mrf.mxu0
    %v943 = vadd.f32 %v869, %v942
    %v944 = vpop.f32.mrf.mxu0
    %945 = vmatprep.mubr.f32.mxu0 %v689
    %946 = vmatmul.mubr.f32.gmra.mxu0 %v688
    %v947 = vpop.f32.mrf.mxu0
    %v948 = vadd.f32 %v869, %v947
    %v949 = vpop.f32.mrf.mxu0
    %950 = vmatprep.mubr.f32.mxu0 %v693
    %951 = vmatmul.mubr.f32.gmra.mxu0 %v692
    %v952 = vpop.f32.mrf.mxu0
    %v953 = vadd.f32 %v869, %v952
    %v954 = vpop.f32.mrf.mxu0
    %955 = vmatprep.mubr.f32.mxu0 %v697
    %956 = vmatmul.mubr.f32.gmra.mxu0 %v696
    %v957 = vpop.f32.mrf.mxu0
    %v958 = vadd.f32 %v869, %v957
    %v959 = vpop.f32.mrf.mxu0
    %960 = vmatprep.mubr.f32.mxu0 %v701
    %961 = vmatmul.mubr.f32.gmra.mxu0 %v700
    %v962 = vpop.f32.mrf.mxu0
    %v963 = vadd.f32 %v869, %v962
    %v964 = vpop.f32.mrf.mxu0
    %965 = vmatprep.mubr.f32.mxu0 %v705
    %966 = vmatmul.mubr.f32.gmra.mxu0 %v704
    %v967 = vpop.f32.mrf.mxu0
    %v968 = vadd.f32 %v869, %v967
    %v969 = vpop.f32.mrf.mxu0
    %970 = vmatprep.mubr.f32.mxu0 %v709
    %971 = vmatmul.mubr.f32.gmra.mxu0 %v708
    %v972 = vpop.f32.mrf.mxu0
    %v973 = vadd.f32 %v869, %v972
    %v974 = vpop.f32.mrf.mxu0
    %975 = vmatprep.mubr.f32.mxu0 %v713
    %976 = vmatmul.mubr.f32.gmra.mxu0 %v712
    %v977 = vpop.f32.mrf.mxu0
    %v978 = vadd.f32 %v869, %v977
    %v979 = vpop.f32.mrf.mxu0
    %980 = vmatprep.mubr.f32.mxu0 %v717
    %981 = vmatmul.mubr.f32.gmra.mxu0 %v716
    %v982 = vpop.f32.mrf.mxu0
    %v983 = vadd.f32 %v869, %v982
    %v984 = vpop.f32.mrf.mxu0
    %985 = vmatprep.mubr.f32.mxu0 %v721
    %986 = vmatmul.mubr.f32.gmra.mxu0 %v720
    %v987 = vpop.f32.mrf.mxu0
    %v988 = vadd.f32 %v869, %v987
    %v989 = vpop.f32.mrf.mxu0
    %990 = vmatprep.mubr.f32.mxu0 %v725
    %991 = vmatmul.mubr.f32.gmra.mxu0 %v724
    %v992 = vpop.f32.mrf.mxu0
    %v993 = vadd.f32 %v869, %v992
    %v994 = vpop.f32.mrf.mxu0
    %995 = vmatprep.mubr.f32.mxu0 %v729
    %996 = vmatmul.mubr.f32.gmra.mxu0 %v728
    %v997 = vpop.f32.mrf.mxu0
    %v998 = vadd.f32 %v869, %v997
    %v999 = vpop.f32.mrf.mxu0
    %1000 = vmatprep.mubr.f32.mxu0 %v733
    %1001 = vmatmul.mubr.f32.gmra.mxu0 %v732
    %v1002 = vpop.f32.mrf.mxu0
    %v1003 = vadd.f32 %v869, %v1002
    %v1004 = vpop.f32.mrf.mxu0
    %1005 = vmatprep.mubr.f32.mxu0 %v737
    %1006 = vmatmul.mubr.f32.gmra.mxu0 %v736
    %v1007 = vpop.f32.mrf.mxu0
    %v1008 = vadd.f32 %v869, %v1007
    %v1009 = vpop.f32.mrf.mxu0
    %1010 = vmatprep.mubr.f32.mxu0 %v741
    %1011 = vmatmul.mubr.f32.gmra.mxu0 %v740
    %v1012 = vpop.f32.mrf.mxu0
    %v1013 = vadd.f32 %v869, %v1012
    %v1014 = vpop.f32.mrf.mxu0
    %1015 = vmatprep.mubr.f32.mxu0 %v745
    %1016 = vmatmul.mubr.f32.gmra.mxu0 %v744
    %v1017 = vpop.f32.mrf.mxu0
    %v1018 = vadd.f32 %v869, %v1017
    %v1019 = vpop.f32.mrf.mxu0
    %1020 = vmatprep.mubr.f32.mxu0 %v749
    %1021 = vmatmul.mubr.f32.gmra.mxu0 %v748
    %v1022 = vpop.f32.mrf.mxu0
    %v1023 = vadd.f32 %v869, %v1022
    %v1024 = vpop.f32.mrf.mxu0
    %1025 = vmatprep.mubr.f32.mxu0 %v753
    %1026 = vmatmul.mubr.f32.gmra.mxu0 %v752
    %v1027 = vpop.f32.mrf.mxu0
    %v1028 = vadd.f32 %v869, %v1027
    %v1029 = vpop.f32.mrf.mxu0
    %1030 = vmatprep.mubr.f32.mxu0 %v757
    %1031 = vmatmul.mubr.f32.gmra.mxu0 %v756
    %v1032 = vpop.f32.mrf.mxu0
    %v1033 = vadd.f32 %v869, %v1032
    %v1034 = vpop.f32.mrf.mxu0
    %1035 = vmatprep.mubr.f32.mxu0 %v761
    %1036 = vmatmul.mubr.f32.gmra.mxu0 %v760
    %v1037 = vpop.f32.mrf.mxu0
    %v1038 = vadd.f32 %v869, %v1037
    %v1039 = vpop.f32.mrf.mxu0
    %1040 = vmatprep.mubr.f32.mxu0 %v765
    %1041 = vmatmul.mubr.f32.gmra.mxu0 %v764
    %v1042 = vpop.f32.mrf.mxu0
    %v1043 = vadd.f32 %v869, %v1042
    %v1044 = vpop.f32.mrf.mxu0
    %1045 = vmatprep.mubr.f32.mxu0 %v769
    %1046 = vmatmul.mubr.f32.gmra.mxu0 %v768
    %v1047 = vpop.f32.mrf.mxu0
    %v1048 = vadd.f32 %v869, %v1047
    %v1049 = vpop.f32.mrf.mxu0
    %1050 = vmatprep.mubr.f32.mxu0 %v773
    %1051 = vmatmul.mubr.f32.gmra.mxu0 %v772
    %v1052 = vpop.f32.mrf.mxu0
    %v1053 = vadd.f32 %v869, %v1052
    %v1054 = vpop.f32.mrf.mxu0
    %1055 = vmatprep.mubr.f32.mxu0 %v777
    %1056 = vmatmul.mubr.f32.gmra.mxu0 %v776
    %v1057 = vpop.f32.mrf.mxu0
    %v1058 = vadd.f32 %v869, %v1057
    %v1059 = vpop.f32.mrf.mxu0
    %1060 = vmatprep.mubr.f32.mxu0 %v781
    %1061 = vmatmul.mubr.f32.gmra.mxu0 %v780
    %v1062 = vpop.f32.mrf.mxu0
    %v1063 = vadd.f32 %v869, %v1062
    %v1064 = vpop.f32.mrf.mxu0
    %1065 = vmatprep.mubr.f32.mxu0 %v785
    %1066 = vmatmul.mubr.f32.gmra.mxu0 %v784
    %v1067 = vpop.f32.mrf.mxu0
    %v1068 = vadd.f32 %v869, %v1067
    %v1069 = vpop.f32.mrf.mxu0
    %1070 = vmatprep.mubr.f32.mxu0 %v789
    %1071 = vmatmul.mubr.f32.gmra.mxu0 %v788
    %v1072 = vpop.f32.mrf.mxu0
    %v1073 = vadd.f32 %v869, %v1072
    %v1074 = vpop.f32.mrf.mxu0
    %1075 = vmatprep.mubr.f32.mxu0 %v793
    %1076 = vmatmul.mubr.f32.gmra.mxu0 %v792
    %v1077 = vpop.f32.mrf.mxu0
    %v1078 = vadd.f32 %v869, %v1077
    %v1079 = vpop.f32.mrf.mxu0
    %1080 = vmatprep.mubr.f32.mxu0 %v797
    %1081 = vmatmul.mubr.f32.gmra.mxu0 %v796
    %v1082 = vpop.f32.mrf.mxu0
    %v1083 = vadd.f32 %v869, %v1082
    %v1084 = vpop.f32.mrf.mxu0
    %1085 = vdwg.mxu0
    %1086 = vmatprep.subr.mxu0 0.0
    %1087 = vmatpush1.msra.mxu0 %v847
    %1088 = vmatprep.subr.mxu0 0.0
    %1089 = vmatpush1.msra.mxu0 %v846
    %1090 = vmatprep.subr.mxu0 0.0
    %1091 = vmatpush1.msra.mxu0 %v845
    %1092 = vmatprep.subr.mxu0 0.0
    %1093 = vmatpush1.msra.mxu0 %v844
    %1094 = vmatprep.subr.mxu0 0.0
    %1095 = vmatpush1.msra.mxu0 %v843
    %1096 = vmatprep.subr.mxu0 0.0
    %1097 = vmatpush1.msra.mxu0 %v842
    %1098 = vmatprep.subr.mxu0 0.0
    %1099 = vmatpush1.msra.mxu0 %v841
    %1100 = vmatprep.subr.mxu0 0.0
    %1101 = vmatpush1.msra.mxu0 %v840
    %1102 = vmatprep.subr.mxu0 0.0
    %1103 = vmatpush1.msra.mxu0 %v839
    %1104 = vmatprep.subr.mxu0 0.0
    %1105 = vmatpush1.msra.mxu0 %v838
    %1106 = vmatprep.subr.mxu0 0.0
    %1107 = vmatpush1.msra.mxu0 %v837
    %1108 = vmatprep.subr.mxu0 0.0
    %1109 = vmatpush1.msra.mxu0 %v836
    %1110 = vmatprep.subr.mxu0 0.0
    %1111 = vmatpush1.msra.mxu0 %v835
    %1112 = vmatprep.subr.mxu0 0.0
    %1113 = vmatpush1.msra.mxu0 %v834
    %1114 = vmatprep.subr.mxu0 0.0
    %1115 = vmatpush1.msra.mxu0 %v833
    %1116 = vmatprep.subr.mxu0 0.0
    %1117 = vmatpush1.msra.mxu0 %v832
    %1118 = vmatprep.subr.mxu0 0.0
    %1119 = vmatpush2.msra.mxu0 %v863
    %1120 = vmatprep.subr.mxu0 0.0
    %1121 = vmatpush2.msra.mxu0 %v862
    %1122 = vmatprep.subr.mxu0 0.0
    %1123 = vmatpush2.msra.mxu0 %v861
    %1124 = vmatprep.subr.mxu0 0.0
    %1125 = vmatpush2.msra.mxu0 %v860
    %1126 = vmatprep.subr.mxu0 0.0
    %1127 = vmatpush2.msra.mxu0 %v859
    %1128 = vmatprep.subr.mxu0 0.0
    %1129 = vmatpush2.msra.mxu0 %v858
    %1130 = vmatprep.subr.mxu0 0.0
    %1131 = vmatpush2.msra.mxu0 %v857
    %1132 = vmatprep.subr.mxu0 0.0
    %1133 = vmatpush2.msra.mxu0 %v856
    %1134 = vmatprep.subr.mxu0 0.0
    %1135 = vmatpush2.msra.mxu0 %v855
    %1136 = vmatprep.subr.mxu0 0.0
    %1137 = vmatpush2.msra.mxu0 %v854
    %1138 = vmatprep.subr.mxu0 0.0
    %1139 = vmatpush2.msra.mxu0 %v853
    %1140 = vmatprep.subr.mxu0 0.0
    %1141 = vmatpush2.msra.mxu0 %v852
    %1142 = vmatprep.subr.mxu0 0.0
    %1143 = vmatpush2.msra.mxu0 %v851
    %1144 = vmatprep.subr.mxu0 0.0
    %1145 = vmatpush2.msra.mxu0 %v850
    %1146 = vmatprep.subr.mxu0 0.0
    %1147 = vmatpush2.msra.mxu0 %v849
    %1148 = vmatprep.subr.mxu0 0.0
    %1149 = vmatpush2.msra.mxu0 %v848
    %1150 = vmatprep.mubr.f32.mxu0 %v683
    %1151 = vmatmul.mubr.f32.gmra.mxu0 %v682
    %v1152 = vpop.f32.mrf.mxu0
    %v1153 = vadd.f32 %v938, %v1152
    %v1154 = vpop.f32.mrf.mxu0
    %1155 = vmatprep.mubr.f32.mxu0 %v687
    %1156 = vmatmul.mubr.f32.gmra.mxu0 %v686
    %v1157 = vpop.f32.mrf.mxu0
    %v1158 = vadd.f32 %v943, %v1157
    %v1159 = vpop.f32.mrf.mxu0
    %1160 = vmatprep.mubr.f32.mxu0 %v691
    %1161 = vmatmul.mubr.f32.gmra.mxu0 %v690
    %v1162 = vpop.f32.mrf.mxu0
    %v1163 = vadd.f32 %v948, %v1162
    %v1164 = vpop.f32.mrf.mxu0
    %1165 = vmatprep.mubr.f32.mxu0 %v695
    %1166 = vmatmul.mubr.f32.gmra.mxu0 %v694
    %v1167 = vpop.f32.mrf.mxu0
    %v1168 = vadd.f32 %v953, %v1167
    %v1169 = vpop.f32.mrf.mxu0
    %1170 = vmatprep.mubr.f32.mxu0 %v699
    %1171 = vmatmul.mubr.f32.gmra.mxu0 %v698
    %v1172 = vpop.f32.mrf.mxu0
    %v1173 = vadd.f32 %v958, %v1172
    %v1174 = vpop.f32.mrf.mxu0
    %1175 = vmatprep.mubr.f32.mxu0 %v703
    %1176 = vmatmul.mubr.f32.gmra.mxu0 %v702
    %v1177 = vpop.f32.mrf.mxu0
    %v1178 = vadd.f32 %v963, %v1177
    %v1179 = vpop.f32.mrf.mxu0
    %1180 = vmatprep.mubr.f32.mxu0 %v707
    %1181 = vmatmul.mubr.f32.gmra.mxu0 %v706
    %v1182 = vpop.f32.mrf.mxu0
    %v1183 = vadd.f32 %v968, %v1182
    %v1184 = vpop.f32.mrf.mxu0
    %1185 = vmatprep.mubr.f32.mxu0 %v711
    %1186 = vmatmul.mubr.f32.gmra.mxu0 %v710
    %v1187 = vpop.f32.mrf.mxu0
    %v1188 = vadd.f32 %v973, %v1187
    %v1189 = vpop.f32.mrf.mxu0
    %1190 = vmatprep.mubr.f32.mxu0 %v715
    %1191 = vmatmul.mubr.f32.gmra.mxu0 %v714
    %v1192 = vpop.f32.mrf.mxu0
    %v1193 = vadd.f32 %v978, %v1192
    %v1194 = vpop.f32.mrf.mxu0
    %1195 = vmatprep.mubr.f32.mxu0 %v719
    %1196 = vmatmul.mubr.f32.gmra.mxu0 %v718
    %v1197 = vpop.f32.mrf.mxu0
    %v1198 = vadd.f32 %v983, %v1197
    %v1199 = vpop.f32.mrf.mxu0
    %1200 = vmatprep.mubr.f32.mxu0 %v723
    %1201 = vmatmul.mubr.f32.gmra.mxu0 %v722
    %v1202 = vpop.f32.mrf.mxu0
    %v1203 = vadd.f32 %v988, %v1202
    %v1204 = vpop.f32.mrf.mxu0
    %1205 = vmatprep.mubr.f32.mxu0 %v727
    %1206 = vmatmul.mubr.f32.gmra.mxu0 %v726
    %v1207 = vpop.f32.mrf.mxu0
    %v1208 = vadd.f32 %v993, %v1207
    %v1209 = vpop.f32.mrf.mxu0
    %1210 = vmatprep.mubr.f32.mxu0 %v731
    %1211 = vmatmul.mubr.f32.gmra.mxu0 %v730
    %v1212 = vpop.f32.mrf.mxu0
    %v1213 = vadd.f32 %v998, %v1212
    %v1214 = vpop.f32.mrf.mxu0
    %1215 = vmatprep.mubr.f32.mxu0 %v735
    %1216 = vmatmul.mubr.f32.gmra.mxu0 %v734
    %v1217 = vpop.f32.mrf.mxu0
    %v1218 = vadd.f32 %v1003, %v1217
    %v1219 = vpop.f32.mrf.mxu0
    %1220 = vmatprep.mubr.f32.mxu0 %v739
    %1221 = vmatmul.mubr.f32.gmra.mxu0 %v738
    %v1222 = vpop.f32.mrf.mxu0
    %v1223 = vadd.f32 %v1008, %v1222
    %v1224 = vpop.f32.mrf.mxu0
    %1225 = vmatprep.mubr.f32.mxu0 %v743
    %1226 = vmatmul.mubr.f32.gmra.mxu0 %v742
    %v1227 = vpop.f32.mrf.mxu0
    %v1228 = vadd.f32 %v1013, %v1227
    %v1229 = vpop.f32.mrf.mxu0
    %1230 = vmatprep.mubr.f32.mxu0 %v747
    %1231 = vmatmul.mubr.f32.gmra.mxu0 %v746
    %v1232 = vpop.f32.mrf.mxu0
    %v1233 = vadd.f32 %v1018, %v1232
    %v1234 = vpop.f32.mrf.mxu0
    %1235 = vmatprep.mubr.f32.mxu0 %v751
    %1236 = vmatmul.mubr.f32.gmra.mxu0 %v750
    %v1237 = vpop.f32.mrf.mxu0
    %v1238 = vadd.f32 %v1023, %v1237
    %v1239 = vpop.f32.mrf.mxu0
    %1240 = vmatprep.mubr.f32.mxu0 %v755
    %1241 = vmatmul.mubr.f32.gmra.mxu0 %v754
    %v1242 = vpop.f32.mrf.mxu0
    %v1243 = vadd.f32 %v1028, %v1242
    %v1244 = vpop.f32.mrf.mxu0
    %1245 = vmatprep.mubr.f32.mxu0 %v759
    %1246 = vmatmul.mubr.f32.gmra.mxu0 %v758
    %v1247 = vpop.f32.mrf.mxu0
    %v1248 = vadd.f32 %v1033, %v1247
    %v1249 = vpop.f32.mrf.mxu0
    %1250 = vmatprep.mubr.f32.mxu0 %v763
    %1251 = vmatmul.mubr.f32.gmra.mxu0 %v762
    %v1252 = vpop.f32.mrf.mxu0
    %v1253 = vadd.f32 %v1038, %v1252
    %v1254 = vpop.f32.mrf.mxu0
    %1255 = vmatprep.mubr.f32.mxu0 %v767
    %1256 = vmatmul.mubr.f32.gmra.mxu0 %v766
    %v1257 = vpop.f32.mrf.mxu0
    %v1258 = vadd.f32 %v1043, %v1257
    %v1259 = vpop.f32.mrf.mxu0
    %1260 = vmatprep.mubr.f32.mxu0 %v771
    %1261 = vmatmul.mubr.f32.gmra.mxu0 %v770
    %v1262 = vpop.f32.mrf.mxu0
    %v1263 = vadd.f32 %v1048, %v1262
    %v1264 = vpop.f32.mrf.mxu0
    %1265 = vmatprep.mubr.f32.mxu0 %v775
    %1266 = vmatmul.mubr.f32.gmra.mxu0 %v774
    %v1267 = vpop.f32.mrf.mxu0
    %v1268 = vadd.f32 %v1053, %v1267
    %v1269 = vpop.f32.mrf.mxu0
    %1270 = vmatprep.mubr.f32.mxu0 %v779
    %1271 = vmatmul.mubr.f32.gmra.mxu0 %v778
    %v1272 = vpop.f32.mrf.mxu0
    %v1273 = vadd.f32 %v1058, %v1272
    %v1274 = vpop.f32.mrf.mxu0
    %1275 = vmatprep.mubr.f32.mxu0 %v783
    %1276 = vmatmul.mubr.f32.gmra.mxu0 %v782
    %v1277 = vpop.f32.mrf.mxu0
    %v1278 = vadd.f32 %v1063, %v1277
    %v1279 = vpop.f32.mrf.mxu0
    %1280 = vmatprep.mubr.f32.mxu0 %v787
    %1281 = vmatmul.mubr.f32.gmra.mxu0 %v786
    %v1282 = vpop.f32.mrf.mxu0
    %v1283 = vadd.f32 %v1068, %v1282
    %v1284 = vpop.f32.mrf.mxu0
    %1285 = vmatprep.mubr.f32.mxu0 %v791
    %1286 = vmatmul.mubr.f32.gmra.mxu0 %v790
    %v1287 = vpop.f32.mrf.mxu0
    %v1288 = vadd.f32 %v1073, %v1287
    %v1289 = vpop.f32.mrf.mxu0
    %1290 = vmatprep.mubr.f32.mxu0 %v795
    %1291 = vmatmul.mubr.f32.gmra.mxu0 %v794
    %v1292 = vpop.f32.mrf.mxu0
    %v1293 = vadd.f32 %v1078, %v1292
    %v1294 = vpop.f32.mrf.mxu0
    %1295 = vmatprep.mubr.f32.mxu0 %v799
    %1296 = vmatmul.mubr.f32.gmra.mxu0 %v798
    %v1297 = vpop.f32.mrf.mxu0
    %v1298 = vadd.f32 %v1083, %v1297
    %v1299 = vpop.f32.mrf.mxu0
    %1300 = vdwg.mxu0
    %1301 = vst [vmem:[#allocation10] sm:$0xff] %v1153
    %1302 = vst [vmem:[#allocation10 + $0x8] sm:$0xff] %v1158
    %1303 = vst [vmem:[#allocation10 + $0x10] sm:$0xff] %v1163
    %1304 = vst [vmem:[#allocation10 + $0x18] sm:$0xff] %v1168
    %1305 = vst [vmem:[#allocation10 + $0x20] sm:$0xff] %v1173
    %1306 = vst [vmem:[#allocation10 + $0x28] sm:$0xff] %v1178
    %1307 = vst [vmem:[#allocation10 + $0x30] sm:$0xff] %v1183
    %1308 = vst [vmem:[#allocation10 + $0x38] sm:$0xff] %v1188
    %1309 = vst [vmem:[#allocation10 + $0x40] sm:$0xff] %v1193
    %1310 = vst [vmem:[#allocation10 + $0x48] sm:$0xff] %v1198
    %1311 = vst [vmem:[#allocation10 + $0x50] sm:$0xff] %v1203
    %1312 = vst [vmem:[#allocation10 + $0x58] sm:$0xff] %v1208
    %1313 = vst [vmem:[#allocation10 + $0x60] sm:$0xff] %v1213
    %1314 = vst [vmem:[#allocation10 + $0x68] sm:$0xff] %v1218
    %1315 = vst [vmem:[#allocation10 + $0x70] sm:$0xff] %v1223
    %1316 = vst [vmem:[#allocation10 + $0x78] sm:$0xff] %v1228
    %1317 = vst [vmem:[#allocation10 + $0x80] sm:$0xff] %v1233
    %1318 = vst [vmem:[#allocation10 + $0x88] sm:$0xff] %v1238
    %1319 = vst [vmem:[#allocation10 + $0x90] sm:$0xff] %v1243
    %1320 = vst [vmem:[#allocation10 + $0x98] sm:$0xff] %v1248
    %1321 = vst [vmem:[#allocation10 + $0xa0] sm:$0xff] %v1253
    %1322 = vst [vmem:[#allocation10 + $0xa8] sm:$0xff] %v1258
    %1323 = vst [vmem:[#allocation10 + $0xb0] sm:$0xff] %v1263
    %1324 = vst [vmem:[#allocation10 + $0xb8] sm:$0xff] %v1268
    %1325 = vst [vmem:[#allocation10 + $0xc0] sm:$0xff] %v1273
    %1326 = vst [vmem:[#allocation10 + $0xc8] sm:$0xff] %v1278
    %1327 = vst [vmem:[#allocation10 + $0xd0] sm:$0xff] %v1283
    %1328 = vst [vmem:[#allocation10 + $0xd8] sm:$0xff] %v1288
    %1329 = vst [vmem:[#allocation10 + $0xe0] sm:$0xff] %v1293
    %1330 = vst [vmem:[#allocation10 + $0xe8] sm:$0xff] %v1298
    // Predicated region
    $region38: #{tpu_custom_call.1} parent=1 // pred_check
      _
    $region39: #{tpu_custom_call.1} parent=1 // pred_check_branch
      %1332 = sbr.rel (0) target = $region41
    $region40: #{tpu_custom_call.1} parent=1 // pred_region
      %s1334 = ssub.s32 3840, 3840
      %1335 = vsyncadd [#allocation4], %s1334
      %s1336 = sshll.u32 [#allocation10], 4
      %s1337 = int_to_ptr.vmem [resolvable:$true] %s1336
      %1342 = dma.vmem_to_hbm [thread:$0]  %s1337, 3840, %s5, [#allocation4], 128, 128, 8
    $region41: #{tpu_custom_call.1} parent=1 // pred_fallthru
      _
    // Predicated region
    $region42: #{tpu_custom_call.1} parent=1 // pred_check
      _
    $region43: #{tpu_custom_call.1} parent=1 // pred_check_branch
      %1344 = sbr.rel (0) target = $region45
    $region44: #{tpu_custom_call.1} parent=1 // pred_region
      %1345 = dma.done [#allocation4], 3840
    $region45: #{tpu_custom_call.1} parent=1 // pred_fallthru
      _
    %1346 = vsyncpa [#allocation3], 1
    %1347 = vsyncpa [#allocation6], 1
    %1348 = vsyncpa [#allocation9], 1
    %1349 = vsyncpa [#allocation4], 1

</llo_original>
